<compile_context>
chip_gen: v7x
topology: tpu7x:2x2x1
jax: 0.10.0
libtpu: 0.0.40
codegen_flags: <defaults>
</compile_context>

<pallas_src>
import functools

import jax
import jax.numpy as jnp
from jax.experimental import pallas as pl
from jax.experimental.pallas import tpu as pltpu


def _round_up(x, m):
    return (x + m - 1) // m * m


# ------------------- pass 1: per-tile partial max of h2 ------------------- #
def _partial_max_kernel(
    pc_ref,                    # (1, TN, 6)  bf16 point tile (xyz+normals)
    w1_ref, b1_ref,            # (6, H1) bf16 / (1, H1) f32
    w2_ref, b2_ref,            # (H1, H2) bf16 / (1, H2) f32
    pmax_ref,                  # out (1, 1, H2) f32: this tile's max of h2
    *, n_valid, tile_n, need_mask,
):
    x = pc_ref[0]                                                     # [TN, 6] bf16
    h1 = jnp.dot(x, w1_ref[...], preferred_element_type=jnp.float32) + b1_ref[...]
    h1 = jnp.maximum(h1, 0.0)                                         # [TN, H1]
    h2 = jnp.dot(h1.astype(jnp.bfloat16), w2_ref[...],
                 preferred_element_type=jnp.float32) + b2_ref[...]
    h2 = jnp.maximum(h2, 0.0)                                         # [TN, H2]

    if need_mask:
        # h2 >= 0 post-ReLU and every tile holds >= 1 valid point, so a 0.0
        # fill is exact (no -inf constants, cheaper VPU select).
        t = pl.program_id(1)
        row = jax.lax.broadcasted_iota(jnp.int32, h2.shape, 0) + t * tile_n
        h2 = jnp.where(row < n_valid, h2, 0.0)

    pmax_ref[0] = jnp.max(h2, axis=0, keepdims=True)                  # (1, H2)


# ----------------- pass 2: per-point features + score head ---------------- #
def _score_kernel(
    pc_ref,                    # (1, TN, 6)  bf16
    gproj_ref,                 # (1, 1, H2)  f32  (global feature, pre-projected)
    w1_ref, b1_ref,            # (6, H1) bf16 / (1, H1) f32
    w2_ref, b2_ref,            # (H1, H2) bf16 / (1, H2) f32
    w3a_ref,                   # (H2, H2) bf16
    w4_ref, b4_ref,            # (H2, H1) bf16 / (1, H1) f32
    w5_ref, b5_ref,            # (1, H1) bf16 / (1, 1) f32
    feat_ref,                  # out (1, TN, H2)   (bf16 by default)
    score_ref,                 # out (1, 1, TN)    lane-dense f32 scores
):
    x = pc_ref[0]                                                     # [TN, 6] bf16
    h1 = jnp.dot(x, w1_ref[...], preferred_element_type=jnp.float32) + b1_ref[...]
    h1 = jnp.maximum(h1, 0.0)
    h2 = jnp.dot(h1.astype(jnp.bfloat16), w2_ref[...],
                 preferred_element_type=jnp.float32) + b2_ref[...]
    h2 = jnp.maximum(h2, 0.0)                                         # [TN, H2]

    # fuse local + pre-projected global feature (concat-equivalent split form)
    fused = (jnp.dot(h2.astype(jnp.bfloat16), w3a_ref[...],
                     preferred_element_type=jnp.float32)
             + gproj_ref[0])                                          # bcast (1,H2)
    feat = jnp.maximum(fused, 0.0)                                    # [TN, H2]
    feat_ref[0] = feat.astype(feat_ref.dtype)

    s1 = jnp.dot(feat.astype(jnp.bfloat16), w4_ref[...],
                 preferred_element_type=jnp.float32) + b4_ref[...]
    s1 = jnp.maximum(s1, 0.0)                                         # [TN, H1]

    # final H1 -> 1 layer as a [1,H1] x [TN,H1]^T contraction: the result
    # lands directly as a lane-dense (1, TN) row (no width-1 masked stores).
    logits = jnp.einsum("ch,nh->cn", w5_ref[...], s1.astype(jnp.bfloat16),
                        preferred_element_type=jnp.float32) + b5_ref[...]
    score_ref[0] = jax.nn.sigmoid(logits).astype(score_ref.dtype)


# ----------------------------- params / wrapper --------------------------- #
def init_params(key, h1=64, h2=128):
    # h1 kept at 64 to match the reference head: the kernel is HBM-bound, so
    # widening it for MXU fill would only add FLOPs and feature bytes.
    ks = jax.random.split(key, 7)
    sc = 0.1
    wdt = jnp.bfloat16           # MXU-native operand dtype (f32 accumulation)
    return {
        "w1": (sc * jax.random.normal(ks[0], (6, h1), jnp.float32)).astype(wdt),
        "b1": jnp.zeros((1, h1), jnp.float32),
        "w2": (sc * jax.random.normal(ks[1], (h1, h2), jnp.float32)).astype(wdt),
        "b2": jnp.zeros((1, h2), jnp.float32),
        "w3a": (sc * jax.random.normal(ks[2], (h2, h2), jnp.float32)).astype(wdt),
        "w3b": (sc * jax.random.normal(ks[3], (h2, h2), jnp.float32)).astype(wdt),
        "b3": jnp.zeros((1, h2), jnp.float32),
        "w4": (sc * jax.random.normal(ks[4], (h2, h1), jnp.float32)).astype(wdt),
        "b4": jnp.zeros((1, h1), jnp.float32),
        "w5": (sc * jax.random.normal(ks[5], (1, h1), jnp.float32)).astype(wdt),
        "b5": jnp.zeros((1, 1), jnp.float32),
    }


@functools.partial(jax.jit, static_argnames=("training", "feat_dtype"))
def scorenet_forward(pc, pc_score, params, training=True,
                     feat_dtype=jnp.bfloat16):
    """pc: [B, A, 24] float32, pc_score: [B, A] float32.

    Returns (all_feature [B, A, 128], output_score [B, A], loss scalar).
    """
    B, N, _ = pc.shape
    h1 = params["w1"].shape[1]
    h2 = params["w2"].shape[1]

    # Point tile: 2048 points (sweep 1024-4096) amortizes the ~0.35 us
    # per-grid-step overhead; small clouds get a single 16-aligned tile.
    tn = 2048 if N > 2048 else _round_up(N, 16)
    n_pad = _round_up(N, tn)
    nt = n_pad // tn
    need_mask = n_pad != N

    # Slice to the 6 used channels and cast to bf16 ONCE; pad the small
    # array, not the 24-channel f32 one.
    pc6 = pc[..., :6].astype(jnp.bfloat16)                  # [B, N, 6] bf16
    if need_mask:
        pc6 = jnp.pad(pc6, ((0, 0), (0, n_pad - N), (0, 0)))

    wdt = jnp.bfloat16
    w1, w2 = params["w1"].astype(wdt), params["w2"].astype(wdt)
    w3a, w3b = params["w3a"].astype(wdt), params["w3b"].astype(wdt)
    w4, w5 = params["w4"].astype(wdt), params["w5"].astype(wdt)
    b1 = params["b1"].astype(jnp.float32)
    b2 = params["b2"].astype(jnp.float32)
    b3 = params["b3"].astype(jnp.float32)
    b4 = params["b4"].astype(jnp.float32)
    b5 = params["b5"].astype(jnp.float32)

    def full(a):
        return pl.BlockSpec(a.shape, lambda b, i: (0,) * a.ndim)

    pc_spec = pl.BlockSpec((1, tn, 6), lambda b, i: (b, i, 0))

    # ---- pass 1: per-tile partial maxes (both grid axes fully parallel) ----
    pmax = pl.pallas_call(
        functools.partial(_partial_max_kernel, n_valid=N, tile_n=tn,
                          need_mask=need_mask),
        out_shape=jax.ShapeDtypeStruct((B, nt, h2), jnp.float32),
        grid_spec=pltpu.PrefetchScalarGridSpec(
            num_scalar_prefetch=0,
            grid=(B, nt),
            in_specs=[pc_spec, full(w1), full(b1), full(w2), full(b2)],
            out_specs=pl.BlockSpec((1, 1, h2), lambda b, i: (b, i, 0)),
        ),
        compiler_params=pltpu.CompilerParams(
            dimension_semantics=("parallel", "parallel")),
    )(pc6, w1, b1, w2, b2)

    # Final max-reduce over tiles + global-feature projection in plain JAX
    # (tiny: [B,128] @ [128,128]); keeps the M=1 matmul off the kernel tail.
    g = jnp.max(pmax, axis=1)                                # [B, h2] f32
    gproj = (jnp.dot(g.astype(jnp.bfloat16), w3b,
                     preferred_element_type=jnp.float32) + b3)
    gproj = gproj.reshape(B, 1, h2).astype(jnp.float32)      # [B, 1, h2]

    # ---- pass 2: per-point features + score head (fully parallel tiles) ---
    feat, score = pl.pallas_call(
        _score_kernel,
        out_shape=[
            jax.ShapeDtypeStruct((B, n_pad, h2), feat_dtype),
            jax.ShapeDtypeStruct((B, 1, n_pad), jnp.float32),
        ],
        grid_spec=pltpu.PrefetchScalarGridSpec(
            num_scalar_prefetch=0,
            grid=(B, nt),
            in_specs=[pc_spec,
                      pl.BlockSpec((1, 1, h2), lambda b, i: (b, 0, 0)),
                      full(w1), full(b1), full(w2), full(b2), full(w3a),
                      full(w4), full(b4), full(w5), full(b5)],
            out_specs=[pl.BlockSpec((1, tn, h2), lambda b, i: (b, i, 0)),
                       pl.BlockSpec((1, 1, tn), lambda b, i: (b, 0, i))],
        ),
        compiler_params=pltpu.CompilerParams(
            dimension_semantics=("parallel", "parallel")),
    )(pc6, gproj, w1, b1, w2, b2, w3a, w4, b4, w5, b5)

    all_feature = feat[:, :N, :]
    output_score = score[:, 0, :N]
    if training:
        # MSELoss(reduction='mean') recomputed in the wrapper from the scores.
        loss = jnp.mean((output_score - pc_score.astype(jnp.float32)) ** 2)
        return all_feature, output_score, loss
    return all_feature, output_score, None


# ------------------------------------ main -------------------------------- #
if __name__ == "__main__":
    key = jax.random.PRNGKey(0)
    k_pc, k_score = jax.random.split(key, 2)

    B, A = 2, 100                        # small; non-multiple-of-tile N
    #                                      exercises the pad + mask path
    pc = jax.random.normal(k_pc, (B, A, 24), jnp.float32)        # [B, A, 24]
    pc_score = jax.random.uniform(k_score, (B, A), jnp.float32)  # [B, A]

    params = init_params(jax.random.PRNGKey(42))

    all_feature, output_score, loss = scorenet_forward(pc, pc_score, params,
                                                       training=True)
    jax.block_until_ready((all_feature, output_score, loss))

    assert all_feature.shape == (B, A, 128)
    assert output_score.shape == (B, A)
    assert loss.shape == ()
    assert bool(jnp.isfinite(loss))
    assert bool(jnp.all(jnp.isfinite(output_score)))
    print("KERNEL_OK")
</pallas_src>

<mosaic_0001>
module attributes {stable_mosaic.version = 11 : i64} {
  func.func @_partial_max_kernel(%arg0: i32, %arg1: i32, %arg2: memref<1x112x6xbf16, #tpu.memory_space<vmem>>, %arg3: memref<6x64xbf16, #tpu.memory_space<vmem>>, %arg4: memref<1x64xf32, #tpu.memory_space<vmem>>, %arg5: memref<64x128xbf16, #tpu.memory_space<vmem>>, %arg6: memref<1x128xf32, #tpu.memory_space<vmem>>, %arg7: memref<1x1x128xf32, #tpu.memory_space<vmem>>) attributes {dimension_semantics = [#tpu.dimension_semantics<parallel>, #tpu.dimension_semantics<parallel>], iteration_bounds = array<i64: 2, 1>, scalar_prefetch = 0 : i64, scratch_operands = 0 : i64, tpu.core_type = #tpu.core_type<tc>, window_params = [{transform_indices = @transform_0, window_bounds = array<i64: 1, 112, 6>}, {pipeline_mode = #tpu.pipeline_mode<synchronous>, transform_indices = @transform_1, window_bounds = array<i64: 6, 64>}, {pipeline_mode = #tpu.pipeline_mode<synchronous>, transform_indices = @transform_2, window_bounds = array<i64: 1, 64>}, {pipeline_mode = #tpu.pipeline_mode<synchronous>, transform_indices = @transform_3, window_bounds = array<i64: 64, 128>}, {pipeline_mode = #tpu.pipeline_mode<synchronous>, transform_indices = @transform_4, window_bounds = array<i64: 1, 128>}, {transform_indices = @transform_5, window_bounds = array<i64: 1, 1, 128>}]} {
    %c0 = arith.constant 0 : index
    %c0_0 = arith.constant 0 : index
    %c0_1 = arith.constant 0 : index
    %0 = vector.load %arg2[%c0, %c0_0, %c0_1] : memref<1x112x6xbf16, #tpu.memory_space<vmem>>, vector<1x112x6xbf16>
    %1 = vector.shape_cast %0 : vector<1x112x6xbf16> to vector<112x6xbf16>
    %c0_2 = arith.constant 0 : index
    %c0_3 = arith.constant 0 : index
    %2 = vector.load %arg3[%c0_2, %c0_3] : memref<6x64xbf16, #tpu.memory_space<vmem>>, vector<6x64xbf16>
    %cst = arith.constant dense<0.000000e+00> : vector<112x64xf32>
    %3 = tpu.matmul %1, %2, %cst {dimension_numbers = #tpu.dot_dimension_numbers<[1], [0], [0], [1], [0, 0, 1, 1], [], []>} : vector<112x6xbf16>, vector<6x64xbf16>, vector<112x64xf32> -> vector<112x64xf32>
    %c0_4 = arith.constant 0 : index
    %c0_5 = arith.constant 0 : index
    %4 = vector.load %arg4[%c0_4, %c0_5] : memref<1x64xf32, #tpu.memory_space<vmem>>, vector<1x64xf32>
    %5 = vector.broadcast %4 : vector<1x64xf32> to vector<112x64xf32>
    %6 = arith.addf %3, %5 : vector<112x64xf32>
    %cst_6 = arith.constant 0.000000e+00 : f32
    %7 = vector.broadcast %cst_6 : f32 to vector<112x64xf32>
    %8 = arith.maximumf %6, %7 : vector<112x64xf32>
    %9 = arith.truncf %8 : vector<112x64xf32> to vector<112x64xbf16>
    %c0_7 = arith.constant 0 : index
    %c0_8 = arith.constant 0 : index
    %10 = vector.load %arg5[%c0_7, %c0_8] : memref<64x128xbf16, #tpu.memory_space<vmem>>, vector<64x128xbf16>
    %cst_9 = arith.constant dense<0.000000e+00> : vector<112x128xf32>
    %11 = tpu.matmul %9, %10, %cst_9 {dimension_numbers = #tpu.dot_dimension_numbers<[1], [0], [0], [1], [0, 0, 1, 1], [], []>} : vector<112x64xbf16>, vector<64x128xbf16>, vector<112x128xf32> -> vector<112x128xf32>
    %c0_10 = arith.constant 0 : index
    %c0_11 = arith.constant 0 : index
    %12 = vector.load %arg6[%c0_10, %c0_11] : memref<1x128xf32, #tpu.memory_space<vmem>>, vector<1x128xf32>
    %13 = vector.broadcast %12 : vector<1x128xf32> to vector<112x128xf32>
    %14 = arith.addf %11, %13 : vector<112x128xf32>
    %cst_12 = arith.constant 0.000000e+00 : f32
    %15 = vector.broadcast %cst_12 : f32 to vector<112x128xf32>
    %16 = arith.maximumf %14, %15 : vector<112x128xf32>
    %17 = tpu.iota {dimensions = array<i32: 0>} : vector<112x128xi32>
    %c112_i32 = arith.constant 112 : i32
    %18 = arith.muli %arg1, %c112_i32 : i32
    %19 = vector.broadcast %18 : i32 to vector<112x128xi32>
    %20 = arith.addi %17, %19 : vector<112x128xi32>
    %c100_i32 = arith.constant 100 : i32
    %21 = vector.broadcast %c100_i32 : i32 to vector<112x128xi32>
    %22 = arith.cmpi slt, %20, %21 : vector<112x128xi32>
    %cst_13 = arith.constant 0.000000e+00 : f32
    %23 = vector.broadcast %cst_13 : f32 to vector<112x128xf32>
    %24 = arith.select %22, %16, %23 : vector<112x128xi1>, vector<112x128xf32>
    %cst_14 = arith.constant dense<0xFF800000> : vector<128xf32>
    %25 = vector.multi_reduction <maximumf>, %24, %cst_14 [0] : vector<112x128xf32> to vector<128xf32>
    %26 = vector.shape_cast %25 : vector<128xf32> to vector<1x128xf32>
    %c0_15 = arith.constant 0 : index
    %c0_16 = arith.constant 0 : index
    %c0_17 = arith.constant 0 : index
    %27 = vector.load %arg7[%c0_15, %c0_16, %c0_17] : memref<1x1x128xf32, #tpu.memory_space<vmem>>, vector<1x1x128xf32>
    %28 = vector.shape_cast %27 : vector<1x1x128xf32> to vector<1x128xf32>
    %29 = vector.shape_cast %26 : vector<1x128xf32> to vector<1x1x128xf32>
    tpu.vector_store %arg7[%c0_15, %c0_16, %c0_17], %29 {strides = array<i32>} : memref<1x1x128xf32, #tpu.memory_space<vmem>>, vector<1x1x128xf32>,
    return
  }
  func.func @transform_0(%arg0: i32, %arg1: i32) -> (i32, i32, i32) {
    %c0_i32 = arith.constant 0 : i32
    %c0_i32_0 = arith.constant 0 : i32
    return %arg0, %arg1, %c0_i32 : i32, i32, i32
  }
  func.func @transform_1(%arg0: i32, %arg1: i32) -> (i32, i32) {
    %c0_i32 = arith.constant 0 : i32
    %c0_i32_0 = arith.constant 0 : i32
    %c0_i32_1 = arith.constant 0 : i32
    return %c0_i32, %c0_i32_0 : i32, i32
  }
  func.func @transform_2(%arg0: i32, %arg1: i32) -> (i32, i32) {
    %c0_i32 = arith.constant 0 : i32
    %c0_i32_0 = arith.constant 0 : i32
    %c0_i32_1 = arith.constant 0 : i32
    return %c0_i32, %c0_i32_0 : i32, i32
  }
  func.func @transform_3(%arg0: i32, %arg1: i32) -> (i32, i32) {
    %c0_i32 = arith.constant 0 : i32
    %c0_i32_0 = arith.constant 0 : i32
    %c0_i32_1 = arith.constant 0 : i32
    return %c0_i32, %c0_i32_0 : i32, i32
  }
  func.func @transform_4(%arg0: i32, %arg1: i32) -> (i32, i32) {
    %c0_i32 = arith.constant 0 : i32
    %c0_i32_0 = arith.constant 0 : i32
    %c0_i32_1 = arith.constant 0 : i32
    return %c0_i32, %c0_i32_0 : i32, i32
  }
  func.func @transform_5(%arg0: i32, %arg1: i32) -> (i32, i32, i32) {
    %c0_i32 = arith.constant 0 : i32
    %c0_i32_0 = arith.constant 0 : i32
    return %arg0, %arg1, %c0_i32 : i32, i32, i32
  }
}

module attributes {stable_mosaic.version = 11 : i64} {
  func.func @_score_kernel(%arg0: i32, %arg1: i32, %arg2: memref<1x112x6xbf16, #tpu.memory_space<vmem>>, %arg3: memref<1x1x128xf32, #tpu.memory_space<vmem>>, %arg4: memref<6x64xbf16, #tpu.memory_space<vmem>>, %arg5: memref<1x64xf32, #tpu.memory_space<vmem>>, %arg6: memref<64x128xbf16, #tpu.memory_space<vmem>>, %arg7: memref<1x128xf32, #tpu.memory_space<vmem>>, %arg8: memref<128x128xbf16, #tpu.memory_space<vmem>>, %arg9: memref<128x64xbf16, #tpu.memory_space<vmem>>, %arg10: memref<1x64xf32, #tpu.memory_space<vmem>>, %arg11: memref<1x64xbf16, #tpu.memory_space<vmem>>, %arg12: memref<1x1xf32, #tpu.memory_space<vmem>>, %arg13: memref<1x112x128xbf16, #tpu.memory_space<vmem>>, %arg14: memref<1x1x112xf32, #tpu.memory_space<vmem>>) attributes {dimension_semantics = [#tpu.dimension_semantics<parallel>, #tpu.dimension_semantics<parallel>], iteration_bounds = array<i64: 2, 1>, scalar_prefetch = 0 : i64, scratch_operands = 0 : i64, tpu.core_type = #tpu.core_type<tc>, window_params = [{transform_indices = @transform_0, window_bounds = array<i64: 1, 112, 6>}, {transform_indices = @transform_1, window_bounds = array<i64: 1, 1, 128>}, {pipeline_mode = #tpu.pipeline_mode<synchronous>, transform_indices = @transform_2, window_bounds = array<i64: 6, 64>}, {pipeline_mode = #tpu.pipeline_mode<synchronous>, transform_indices = @transform_3, window_bounds = array<i64: 1, 64>}, {pipeline_mode = #tpu.pipeline_mode<synchronous>, transform_indices = @transform_4, window_bounds = array<i64: 64, 128>}, {pipeline_mode = #tpu.pipeline_mode<synchronous>, transform_indices = @transform_5, window_bounds = array<i64: 1, 128>}, {pipeline_mode = #tpu.pipeline_mode<synchronous>, transform_indices = @transform_6, window_bounds = array<i64: 128, 128>}, {pipeline_mode = #tpu.pipeline_mode<synchronous>, transform_indices = @transform_7, window_bounds = array<i64: 128, 64>}, {pipeline_mode = #tpu.pipeline_mode<synchronous>, transform_indices = @transform_8, window_bounds = array<i64: 1, 64>}, {pipeline_mode = #tpu.pipeline_mode<synchronous>, transform_indices = @transform_9, window_bounds = array<i64: 1, 64>}, {pipeline_mode = #tpu.pipeline_mode<synchronous>, transform_indices = @transform_10, window_bounds = array<i64: 1, 1>}, {transform_indices = @transform_11, window_bounds = array<i64: 1, 112, 128>}, {transform_indices = @transform_12, window_bounds = array<i64: 1, 1, 112>}]} {
    %c0 = arith.constant 0 : index
    %c0_0 = arith.constant 0 : index
    %c0_1 = arith.constant 0 : index
    %0 = vector.load %arg2[%c0, %c0_0, %c0_1] : memref<1x112x6xbf16, #tpu.memory_space<vmem>>, vector<1x112x6xbf16>
    %1 = vector.shape_cast %0 : vector<1x112x6xbf16> to vector<112x6xbf16>
    %c0_2 = arith.constant 0 : index
    %c0_3 = arith.constant 0 : index
    %2 = vector.load %arg4[%c0_2, %c0_3] : memref<6x64xbf16, #tpu.memory_space<vmem>>, vector<6x64xbf16>
    %cst = arith.constant dense<0.000000e+00> : vector<112x64xf32>
    %3 = tpu.matmul %1, %2, %cst {dimension_numbers = #tpu.dot_dimension_numbers<[1], [0], [0], [1], [0, 0, 1, 1], [], []>} : vector<112x6xbf16>, vector<6x64xbf16>, vector<112x64xf32> -> vector<112x64xf32>
    %c0_4 = arith.constant 0 : index
    %c0_5 = arith.constant 0 : index
    %4 = vector.load %arg5[%c0_4, %c0_5] : memref<1x64xf32, #tpu.memory_space<vmem>>, vector<1x64xf32>
    %5 = vector.broadcast %4 : vector<1x64xf32> to vector<112x64xf32>
    %6 = arith.addf %3, %5 : vector<112x64xf32>
    %cst_6 = arith.constant 0.000000e+00 : f32
    %7 = vector.broadcast %cst_6 : f32 to vector<112x64xf32>
    %8 = arith.maximumf %6, %7 : vector<112x64xf32>
    %9 = arith.truncf %8 : vector<112x64xf32> to vector<112x64xbf16>
    %c0_7 = arith.constant 0 : index
    %c0_8 = arith.constant 0 : index
    %10 = vector.load %arg6[%c0_7, %c0_8] : memref<64x128xbf16, #tpu.memory_space<vmem>>, vector<64x128xbf16>
    %cst_9 = arith.constant dense<0.000000e+00> : vector<112x128xf32>
    %11 = tpu.matmul %9, %10, %cst_9 {dimension_numbers = #tpu.dot_dimension_numbers<[1], [0], [0], [1], [0, 0, 1, 1], [], []>} : vector<112x64xbf16>, vector<64x128xbf16>, vector<112x128xf32> -> vector<112x128xf32>
    %c0_10 = arith.constant 0 : index
    %c0_11 = arith.constant 0 : index
    %12 = vector.load %arg7[%c0_10, %c0_11] : memref<1x128xf32, #tpu.memory_space<vmem>>, vector<1x128xf32>
    %13 = vector.broadcast %12 : vector<1x128xf32> to vector<112x128xf32>
    %14 = arith.addf %11, %13 : vector<112x128xf32>
    %cst_12 = arith.constant 0.000000e+00 : f32
    %15 = vector.broadcast %cst_12 : f32 to vector<112x128xf32>
    %16 = arith.maximumf %14, %15 : vector<112x128xf32>
    %17 = arith.truncf %16 : vector<112x128xf32> to vector<112x128xbf16>
    %c0_13 = arith.constant 0 : index
    %c0_14 = arith.constant 0 : index
    %18 = vector.load %arg8[%c0_13, %c0_14] : memref<128x128xbf16, #tpu.memory_space<vmem>>, vector<128x128xbf16>
    %cst_15 = arith.constant dense<0.000000e+00> : vector<112x128xf32>
    %19 = tpu.matmul %17, %18, %cst_15 {dimension_numbers = #tpu.dot_dimension_numbers<[1], [0], [0], [1], [0, 0, 1, 1], [], []>} : vector<112x128xbf16>, vector<128x128xbf16>, vector<112x128xf32> -> vector<112x128xf32>
    %c0_16 = arith.constant 0 : index
    %c0_17 = arith.constant 0 : index
    %c0_18 = arith.constant 0 : index
    %20 = vector.load %arg3[%c0_16, %c0_17, %c0_18] : memref<1x1x128xf32, #tpu.memory_space<vmem>>, vector<1x1x128xf32>
    %21 = vector.shape_cast %20 : vector<1x1x128xf32> to vector<1x128xf32>
    %22 = vector.broadcast %21 : vector<1x128xf32> to vector<112x128xf32>
    %23 = arith.addf %19, %22 : vector<112x128xf32>
    %cst_19 = arith.constant 0.000000e+00 : f32
    %24 = vector.broadcast %cst_19 : f32 to vector<112x128xf32>
    %25 = arith.maximumf %23, %24 : vector<112x128xf32>
    %26 = arith.truncf %25 : vector<112x128xf32> to vector<112x128xbf16>
    %c0_20 = arith.constant 0 : index
    %c0_21 = arith.constant 0 : index
    %c0_22 = arith.constant 0 : index
    %27 = vector.load %arg13[%c0_20, %c0_21, %c0_22] : memref<1x112x128xbf16, #tpu.memory_space<vmem>>, vector<1x112x128xbf16>
    %28 = vector.shape_cast %27 : vector<1x112x128xbf16> to vector<112x128xbf16>
    %29 = vector.shape_cast %26 : vector<112x128xbf16> to vector<1x112x128xbf16>
    tpu.vector_store %arg13[%c0_20, %c0_21, %c0_22], %29 {strides = array<i32>} : memref<1x112x128xbf16, #tpu.memory_space<vmem>>, vector<1x112x128xbf16>,
    %30 = arith.truncf %25 : vector<112x128xf32> to vector<112x128xbf16>
    %c0_23 = arith.constant 0 : index
    %c0_24 = arith.constant 0 : index
    %31 = vector.load %arg9[%c0_23, %c0_24] : memref<128x64xbf16, #tpu.memory_space<vmem>>, vector<128x64xbf16>
    %cst_25 = arith.constant dense<0.000000e+00> : vector<112x64xf32>
    %32 = tpu.matmul %30, %31, %cst_25 {dimension_numbers = #tpu.dot_dimension_numbers<[1], [0], [0], [1], [0, 0, 1, 1], [], []>} : vector<112x128xbf16>, vector<128x64xbf16>, vector<112x64xf32> -> vector<112x64xf32>
    %c0_26 = arith.constant 0 : index
    %c0_27 = arith.constant 0 : index
    %33 = vector.load %arg10[%c0_26, %c0_27] : memref<1x64xf32, #tpu.memory_space<vmem>>, vector<1x64xf32>
    %34 = vector.broadcast %33 : vector<1x64xf32> to vector<112x64xf32>
    %35 = arith.addf %32, %34 : vector<112x64xf32>
    %cst_28 = arith.constant 0.000000e+00 : f32
    %36 = vector.broadcast %cst_28 : f32 to vector<112x64xf32>
    %37 = arith.maximumf %35, %36 : vector<112x64xf32>
    %c0_29 = arith.constant 0 : index
    %c0_30 = arith.constant 0 : index
    %38 = vector.load %arg11[%c0_29, %c0_30] : memref<1x64xbf16, #tpu.memory_space<vmem>>, vector<1x64xbf16>
    %39 = arith.truncf %37 : vector<112x64xf32> to vector<112x64xbf16>
    "tpu.trace_start"() <{level = 10 : i32, message = "ch,nh->cn"}> : () -> ()
    %cst_31 = arith.constant dense<0.000000e+00> : vector<1x112xf32>
    %40 = tpu.matmul %38, %39, %cst_31 {dimension_numbers = #tpu.dot_dimension_numbers<[1], [1], [0], [0], [0, 0, 1, 0], [], []>} : vector<1x64xbf16>, vector<112x64xbf16>, vector<1x112xf32> -> vector<1x112xf32>
    "tpu.trace_stop"() : () -> ()
    %c0_32 = arith.constant 0 : index
    %c0_33 = arith.constant 0 : index
    %41 = vector.load %arg12[%c0_32, %c0_33] : memref<1x1xf32, #tpu.memory_space<vmem>>, vector<1x1xf32>
    %42 = vector.broadcast %41 : vector<1x1xf32> to vector<1x112xf32>
    %43 = arith.addf %40, %42 : vector<1x112xf32>
    %44 = arith.negf %43 : vector<1x112xf32>
    %45 = math.exp %44 : vector<1x112xf32>
    %cst_34 = arith.constant 1.000000e+00 : f32
    %46 = vector.broadcast %cst_34 : f32 to vector<1x112xf32>
    %47 = arith.addf %46, %45 : vector<1x112xf32>
    %48 = arith.divf %46, %47 : vector<1x112xf32>
    %c0_35 = arith.constant 0 : index
    %c0_36 = arith.constant 0 : index
    %c0_37 = arith.constant 0 : index
    %49 = vector.load %arg14[%c0_35, %c0_36, %c0_37] : memref<1x1x112xf32, #tpu.memory_space<vmem>>, vector<1x1x112xf32>
    %50 = vector.shape_cast %49 : vector<1x1x112xf32> to vector<1x112xf32>
    %51 = vector.shape_cast %48 : vector<1x112xf32> to vector<1x1x112xf32>
    tpu.vector_store %arg14[%c0_35, %c0_36, %c0_37], %51 {strides = array<i32>} : memref<1x1x112xf32, #tpu.memory_space<vmem>>, vector<1x1x112xf32>,
    return
  }
  func.func @transform_0(%arg0: i32, %arg1: i32) -> (i32, i32, i32) {
    %c0_i32 = arith.constant 0 : i32
    %c0_i32_0 = arith.constant 0 : i32
    return %arg0, %arg1, %c0_i32 : i32, i32, i32
  }
  func.func @transform_1(%arg0: i32, %arg1: i32) -> (i32, i32, i32) {
    %c0_i32 = arith.constant 0 : i32
    %c0_i32_0 = arith.constant 0 : i32
    %c0_i32_1 = arith.constant 0 : i32
    return %arg0, %c0_i32, %c0_i32_0 : i32, i32, i32
  }
  func.func @transform_2(%arg0: i32, %arg1: i32) -> (i32, i32) {
    %c0_i32 = arith.constant 0 : i32
    %c0_i32_0 = arith.constant 0 : i32
    %c0_i32_1 = arith.constant 0 : i32
    return %c0_i32, %c0_i32_0 : i32, i32
  }
  func.func @transform_3(%arg0: i32, %arg1: i32) -> (i32, i32) {
    %c0_i32 = arith.constant 0 : i32
    %c0_i32_0 = arith.constant 0 : i32
    %c0_i32_1 = arith.constant 0 : i32
    return %c0_i32, %c0_i32_0 : i32, i32
  }
  func.func @transform_4(%arg0: i32, %arg1: i32) -> (i32, i32) {
    %c0_i32 = arith.constant 0 : i32
    %c0_i32_0 = arith.constant 0 : i32
    %c0_i32_1 = arith.constant 0 : i32
    return %c0_i32, %c0_i32_0 : i32, i32
  }
  func.func @transform_5(%arg0: i32, %arg1: i32) -> (i32, i32) {
    %c0_i32 = arith.constant 0 : i32
    %c0_i32_0 = arith.constant 0 : i32
    %c0_i32_1 = arith.constant 0 : i32
    return %c0_i32, %c0_i32_0 : i32, i32
  }
  func.func @transform_6(%arg0: i32, %arg1: i32) -> (i32, i32) {
    %c0_i32 = arith.constant 0 : i32
    %c0_i32_0 = arith.constant 0 : i32
    %c0_i32_1 = arith.constant 0 : i32
    return %c0_i32, %c0_i32_0 : i32, i32
  }
  func.func @transform_7(%arg0: i32, %arg1: i32) -> (i32, i32) {
    %c0_i32 = arith.constant 0 : i32
    %c0_i32_0 = arith.constant 0 : i32
    %c0_i32_1 = arith.constant 0 : i32
    return %c0_i32, %c0_i32_0 : i32, i32
  }
  func.func @transform_8(%arg0: i32, %arg1: i32) -> (i32, i32) {
    %c0_i32 = arith.constant 0 : i32
    %c0_i32_0 = arith.constant 0 : i32
    %c0_i32_1 = arith.constant 0 : i32
    return %c0_i32, %c0_i32_0 : i32, i32
  }
  func.func @transform_9(%arg0: i32, %arg1: i32) -> (i32, i32) {
    %c0_i32 = arith.constant 0 : i32
    %c0_i32_0 = arith.constant 0 : i32
    %c0_i32_1 = arith.constant 0 : i32
    return %c0_i32, %c0_i32_0 : i32, i32
  }
  func.func @transform_10(%arg0: i32, %arg1: i32) -> (i32, i32) {
    %c0_i32 = arith.constant 0 : i32
    %c0_i32_0 = arith.constant 0 : i32
    %c0_i32_1 = arith.constant 0 : i32
    return %c0_i32, %c0_i32_0 : i32, i32
  }
  func.func @transform_11(%arg0: i32, %arg1: i32) -> (i32, i32, i32) {
    %c0_i32 = arith.constant 0 : i32
    %c0_i32_0 = arith.constant 0 : i32
    return %arg0, %arg1, %c0_i32 : i32, i32, i32
  }
  func.func @transform_12(%arg0: i32, %arg1: i32) -> (i32, i32, i32) {
    %c0_i32 = arith.constant 0 : i32
    %c0_i32_0 = arith.constant 0 : i32
    return %arg0, %c0_i32, %arg1 : i32, i32, i32
  }
}

</mosaic_0001>

<llo_original>
// kernel: scorenet_forward.2
$region0: #{scorenet_forward.2}
  #allocation0 [shape = 'u32[]', space=smem, size = 0x4, offset = 0x4, fixed_abs, tag = 'smem constant byte address 0x4 - core index']
  #allocation1 [shape = 'u32[144,128]{1,0:T(1,128)}', space=vmem, size = 0x12000, scoped, tag = 'internal scratch']
  %s0 = inlined_call_operand.vmem [shape: bf16[2,112,6], index: 0, kind: input, shape index: {}]
  %s1 = inlined_call_operand.vmem [shape: bf16[6,64], index: 1, kind: input, shape index: {}]
  %s2 = inlined_call_operand.vmem [shape: f32[1,64], index: 2, kind: input, shape index: {}]
  %s3 = inlined_call_operand.vmem [shape: bf16[64,128], index: 3, kind: input, shape index: {}]
  %s4 = inlined_call_operand.vmem [shape: f32[1,128], index: 4, kind: input, shape index: {}]
  %s5 = inlined_call_operand.vmem [shape: f32[2,1,128], index: 5, kind: output, shape index: {}]
  %s6 = sld [smem:[#allocation0]]
  $region53: #{scorenet_forward.2} parent=0
    _
  %s8 = ssub.s32 1, %s6
  %s9 = scalar_select 0, %s8, %s6
  loop: start=0, step=1, limit=4
  $region2: #{scorenet_forward.2} parent=0 // loop_pre_header
    _
  $region3: #{scorenet_forward.2} parent=0 // loop_header
    %s11 = sphi 0, %s15
    %p12 = scmp.ge.s32.totalorder %s11, 4
    %s18 = sphi 0, %s30
    %s19 = sphi 0, %s26
    %s20 = sphi 0, %s18
    %s21 = sphi 0, %s19
    %s22 = sphi 0, %s20
    %s23 = sphi 0, %s21
    %s35 = sphi 0, %s37
    %s38 = sphi 0, %s35
    %s39 = sphi 0, %s38
    %s55 = sphi 0, %s39
    %s59 = sphi 0, %s59
    %s61 = sphi 0, %s59
    %s62 = sphi 0, %s61
    %s76 = sphi 0, %s62
    %s80 = sphi 0, %s80
    %s82 = sphi 0, %s80
    %s83 = sphi 0, %s82
    %s97 = sphi 0, %s83
    %s101 = sphi 0, %s101
    %s103 = sphi 0, %s101
    %s104 = sphi 0, %s103
    %s118 = sphi 0, %s104
    %s122 = sphi 0, %s122
    %s124 = sphi 0, %s122
    %s125 = sphi 0, %s124
    %s139 = sphi 0, %s125
    %s147 = sphi 0, %s149
    %s150 = sphi 0, %s147
    %s151 = sphi 0, %s150
    %s167 = sphi 0, %s151
  $region4: #{scorenet_forward.2} parent=0 // loop_header_branch
    %14 = sbr.rel (%p12) target = $region8
  $region5: #{scorenet_forward.2} parent=0 // loop_body
    %s16 = ssub.s32 %s11, 1
    %s17 = ssub.s32 %s11, 2
    %s24 = sadd.s32 1, %s19
    %p25 = scmp.ge.s32.totalorder %s24, 1
    %s26 = scalar_select %p25, 0, %s24
    %s27 = sadd.s32 1, %s18
    %s28 = scalar_select %p25, %s27, %s18
    %p29 = scmp.ge.s32.totalorder %s28, 2
    %s30 = scalar_select %p29, 0, %s28
    %s31 = ssub.s32 %s18, %s30
    %s32 = ssub.s32 %s19, %s26
    %s33 = sor.u32 %s31, %s32
    %p34 = scmp.eq.s32.totalorder %s33, 0
    %s36 = sadd.s32 %s35, 1
    %s37 = scalar_select %p34, %s35, %s36
    %p40 = pneg %p34
    %p41 = scmp.eq.s32.totalorder %s11, 1
    %p42 = por %p40, %p41
    %p43 = scmp.ne.s32.totalorder %s35, %s38
    %p44 = scmp.eq.s32.totalorder %s11, 0
    %p45 = por %p43, %p44
    %p46 = scmp.ne.s32.totalorder %s35, %s38
    %p47 = scmp.eq.s32.totalorder %s16, 1
    %p48 = por %p46, %p47
    %p49 = scmp.ne.s32.totalorder %s38, %s39
    %p50 = scmp.eq.s32.totalorder %s16, 0
    %p51 = por %p49, %p50
    %p52 = scmp.ne.s32.totalorder %s38, %s39
    %p53 = scmp.eq.s32.totalorder %s17, 1
    %p54 = por %p52, %p53
    %p56 = scmp.ne.s32.totalorder %s39, %s55
    %p57 = scmp.eq.s32.totalorder %s17, 0
    %p58 = por %p56, %p57
    %s60 = sadd.s32 %s59, 1
    %p63 = scmp.eq.s32.totalorder %s11, 1
    %p64 = scmp.ne.s32.totalorder %s59, %s61
    %p65 = scmp.eq.s32.totalorder %s11, 0
    %p66 = por %p64, %p65
    %p67 = scmp.ne.s32.totalorder %s59, %s61
    %p68 = scmp.eq.s32.totalorder %s16, 1
    %p69 = por %p67, %p68
    %p70 = scmp.ne.s32.totalorder %s61, %s62
    %p71 = scmp.eq.s32.totalorder %s16, 0
    %p72 = por %p70, %p71
    %p73 = scmp.ne.s32.totalorder %s61, %s62
    %p74 = scmp.eq.s32.totalorder %s17, 1
    %p75 = por %p73, %p74
    %p77 = scmp.ne.s32.totalorder %s62, %s76
    %p78 = scmp.eq.s32.totalorder %s17, 0
    %p79 = por %p77, %p78
    %s81 = sadd.s32 %s80, 1
    %p84 = scmp.eq.s32.totalorder %s11, 1
    %p85 = scmp.ne.s32.totalorder %s80, %s82
    %p86 = scmp.eq.s32.totalorder %s11, 0
    %p87 = por %p85, %p86
    %p88 = scmp.ne.s32.totalorder %s80, %s82
    %p89 = scmp.eq.s32.totalorder %s16, 1
    %p90 = por %p88, %p89
    %p91 = scmp.ne.s32.totalorder %s82, %s83
    %p92 = scmp.eq.s32.totalorder %s16, 0
    %p93 = por %p91, %p92
    %p94 = scmp.ne.s32.totalorder %s82, %s83
    %p95 = scmp.eq.s32.totalorder %s17, 1
    %p96 = por %p94, %p95
    %p98 = scmp.ne.s32.totalorder %s83, %s97
    %p99 = scmp.eq.s32.totalorder %s17, 0
    %p100 = por %p98, %p99
    %s102 = sadd.s32 %s101, 1
    %p105 = scmp.eq.s32.totalorder %s11, 1
    %p106 = scmp.ne.s32.totalorder %s101, %s103
    %p107 = scmp.eq.s32.totalorder %s11, 0
    %p108 = por %p106, %p107
    %p109 = scmp.ne.s32.totalorder %s101, %s103
    %p110 = scmp.eq.s32.totalorder %s16, 1
    %p111 = por %p109, %p110
    %p112 = scmp.ne.s32.totalorder %s103, %s104
    %p113 = scmp.eq.s32.totalorder %s16, 0
    %p114 = por %p112, %p113
    %p115 = scmp.ne.s32.totalorder %s103, %s104
    %p116 = scmp.eq.s32.totalorder %s17, 1
    %p117 = por %p115, %p116
    %p119 = scmp.ne.s32.totalorder %s104, %s118
    %p120 = scmp.eq.s32.totalorder %s17, 0
    %p121 = por %p119, %p120
    %s123 = sadd.s32 %s122, 1
    %p126 = scmp.eq.s32.totalorder %s11, 1
    %p127 = scmp.ne.s32.totalorder %s122, %s124
    %p128 = scmp.eq.s32.totalorder %s11, 0
    %p129 = por %p127, %p128
    %p130 = scmp.ne.s32.totalorder %s122, %s124
    %p131 = scmp.eq.s32.totalorder %s16, 1
    %p132 = por %p130, %p131
    %p133 = scmp.ne.s32.totalorder %s124, %s125
    %p134 = scmp.eq.s32.totalorder %s16, 0
    %p135 = por %p133, %p134
    %p136 = scmp.ne.s32.totalorder %s124, %s125
    %p137 = scmp.eq.s32.totalorder %s17, 1
    %p138 = por %p136, %p137
    %p140 = scmp.ne.s32.totalorder %s125, %s139
    %p141 = scmp.eq.s32.totalorder %s17, 0
    %p142 = por %p140, %p141
    %s143 = ssub.s32 %s18, %s30
    %s144 = ssub.s32 %s19, %s26
    %s145 = sor.u32 %s143, %s144
    %p146 = scmp.eq.s32.totalorder %s145, 0
    %s148 = sadd.s32 %s147, 1
    %s149 = scalar_select %p146, %s147, %s148
    %p152 = pneg %p146
    %p153 = scmp.eq.s32.totalorder %s11, 1
    %p154 = por %p152, %p153
    %p155 = scmp.ne.s32.totalorder %s147, %s150
    %p156 = scmp.eq.s32.totalorder %s11, 0
    %p157 = por %p155, %p156
    %p158 = scmp.ne.s32.totalorder %s147, %s150
    %p159 = scmp.eq.s32.totalorder %s16, 1
    %p160 = por %p158, %p159
    %p161 = scmp.ne.s32.totalorder %s150, %s151
    %p162 = scmp.eq.s32.totalorder %s16, 0
    %p163 = por %p161, %p162
    %p164 = scmp.ne.s32.totalorder %s150, %s151
    %p165 = scmp.eq.s32.totalorder %s17, 1
    %p166 = por %p164, %p165
    %p168 = scmp.ne.s32.totalorder %s151, %s167
    %p169 = scmp.eq.s32.totalorder %s17, 0
    %p170 = por %p168, %p169
    %p171 = scmp.le.s32.totalorder 1, %s11
    %p172 = scmp.lt.s32.totalorder %s11, 3
    %p173 = pnand %p171, %p172
    %p174 = pneg %p173
    // Predicated region
    $region9: #{scorenet_forward.2} parent=5 // pred_check
      _
    $region10: #{scorenet_forward.2} parent=5 // pred_check_branch
      %176 = sbr.rel (%p173) target = $region12
    $region11: #{scorenet_forward.2} parent=5 // pred_region
      %s177 = ssub.s32 %s11, 1
      // Predicated region
      $region13: #{scorenet_forward.2} parent=11 // pred_check
        %p178 = pneg %p72
      $region14: #{scorenet_forward.2} parent=11 // pred_check_branch
        %180 = sbr.rel (%p178) target = $region16
      $region15: #{scorenet_forward.2} parent=11 // pred_region
        _
      $region16: #{scorenet_forward.2} parent=11 // pred_fallthru
        _
      // Predicated region
      $region17: #{scorenet_forward.2} parent=11 // pred_check
        %p181 = pneg %p93
      $region18: #{scorenet_forward.2} parent=11 // pred_check_branch
        %183 = sbr.rel (%p181) target = $region20
      $region19: #{scorenet_forward.2} parent=11 // pred_region
        _
      $region20: #{scorenet_forward.2} parent=11 // pred_fallthru
        _
      // Predicated region
      $region21: #{scorenet_forward.2} parent=11 // pred_check
        %p184 = pneg %p114
      $region22: #{scorenet_forward.2} parent=11 // pred_check_branch
        %186 = sbr.rel (%p184) target = $region24
      $region23: #{scorenet_forward.2} parent=11 // pred_region
        _
      $region24: #{scorenet_forward.2} parent=11 // pred_fallthru
        _
      // Predicated region
      $region25: #{scorenet_forward.2} parent=11 // pred_check
        %p187 = pneg %p135
      $region26: #{scorenet_forward.2} parent=11 // pred_check_branch
        %189 = sbr.rel (%p187) target = $region28
      $region27: #{scorenet_forward.2} parent=11 // pred_region
        _
      $region28: #{scorenet_forward.2} parent=11 // pred_fallthru
        _
    $region12: #{scorenet_forward.2} parent=5 // pred_fallthru
      _
    %p190 = scmp.lt.s32.totalorder %s11, 2
    // Predicated region
    $region29: #{scorenet_forward.2} parent=5 // pred_check
      %p191 = pneg %p190
    $region30: #{scorenet_forward.2} parent=5 // pred_check_branch
      %193 = sbr.rel (%p191) target = $region32
    $region31: #{scorenet_forward.2} parent=5 // pred_region
      // Predicated region
      $region33: #{scorenet_forward.2} parent=31 // pred_check
        %p194 = pneg %p45
      $region34: #{scorenet_forward.2} parent=31 // pred_check_branch
        %196 = sbr.rel (%p194) target = $region36
      $region35: #{scorenet_forward.2} parent=31 // pred_region
        %s197 = smul.u32 14, %s19
        %p198 = scmp.lt.s32.totalorder %s18, 1
        %s199 = scalar_select %p198, %s18, 1
        %p200 = scmp.lt.s32.totalorder %s197, 13
        %s201 = scalar_select %p200, %s197, 13
        %s202 = smul.addr %s199, 14
        %s203 = sadd.s32 %s201, %s202
        %s204 = smul.addr %s203, 4
        %s205 = scalar_lea.vmem %s0, %s204
        %s206 = smul.u32 14, %s19
      $region36: #{scorenet_forward.2} parent=31 // pred_fallthru
        _
    $region32: #{scorenet_forward.2} parent=5 // pred_fallthru
      _
    %p207 = scmp.le.s32.totalorder 1, %s11
    %p208 = scmp.lt.s32.totalorder %s11, 3
    %p209 = pnand %p207, %p208
    %p210 = pneg %p209
    // Predicated region
    $region37: #{scorenet_forward.2} parent=5 // pred_check
      _
    $region38: #{scorenet_forward.2} parent=5 // pred_check_branch
      %212 = sbr.rel (%p209) target = $region40
    $region39: #{scorenet_forward.2} parent=5 // pred_region
      %s213 = ssub.s32 %s11, 1
      %s214 = smul.u32 14, %s21
      %p215 = scmp.lt.s32.totalorder %s20, 1
      %s216 = scalar_select %p215, %s20, 1
      %p217 = scmp.lt.s32.totalorder %s214, 13
      %s218 = scalar_select %p217, %s214, 13
      %s219 = smul.addr %s216, 14
      %s220 = sadd.s32 %s218, %s219
      %s221 = smul.addr %s220, 4
      %s222 = scalar_lea.vmem %s0, %s221
      %p223 = pneg %p51
      %p224 = pneg %p48
      %p225 = pneg %p72
      %p226 = pneg %p69
      %p227 = pneg %p93
      %p228 = pneg %p90
      %p229 = pneg %p114
      %p230 = pneg %p111
      %p231 = pneg %p135
      %p232 = pneg %p132
      %p233 = pneg %p163
      %p234 = pneg %p160
      %p235 = scmp.lt.s32.totalorder %s20, 1
      %s236 = scalar_select %p235, %s20, 1
      %p237 = scmp.lt.s32.totalorder %s21, 0
      %s238 = scalar_select %p237, %s21, 0
      %s239 = sadd.s32 %s238, %s236
      %s240 = scalar_lea.vmem %s5, %s239
      %s241 = smul.u32 14, %s21
      %p242 = scmp.lt.s32.totalorder %s20, 1
      %s243 = scalar_select %p242, %s20, 1
      %p244 = scmp.lt.s32.totalorder %s241, 13
      %s245 = scalar_select %p244, %s241, 13
      %s246 = smul.addr %s243, 14
      %s247 = sadd.s32 %s245, %s246
      %s248 = smul.addr %s247, 4
      %s249 = scalar_lea.vmem %s0, %s248
      %s250 = smul.u32 14, %s21
      %p251 = scmp.lt.s32.totalorder %s20, 1
      %s252 = scalar_select %p251, %s20, 1
      %p253 = scmp.lt.s32.totalorder %s21, 0
      %s254 = scalar_select %p253, %s21, 0
      %s255 = sadd.s32 %s254, %s252
      %s256 = scalar_lea.vmem %s5, %s255
      %v258 = vld [vmem:[%s249] sm:$0xf]
      %v259 = vld [vmem:[%s249 + $0x4] sm:$0xf]
      %v260 = vld [vmem:[%s249 + $0x8] sm:$0xf]
      %v261 = vld [vmem:[%s249 + $0xc] sm:$0xf]
      %v262 = vld [vmem:[%s249 + $0x10] sm:$0xf]
      %v263 = vld [vmem:[%s249 + $0x14] sm:$0xf]
      %v264 = vld [vmem:[%s249 + $0x18] sm:$0xf]
      %v265 = vld [vmem:[%s249 + $0x1c] sm:$0xf]
      %v266 = vld [vmem:[%s249 + $0x20] sm:$0xf]
      %v267 = vld [vmem:[%s249 + $0x24] sm:$0xf]
      %v268 = vld [vmem:[%s249 + $0x28] sm:$0xf]
      %v269 = vld [vmem:[%s249 + $0x2c] sm:$0xf]
      %v270 = vld [vmem:[%s249 + $0x30] sm:$0xf]
      %v271 = vld [vmem:[%s249 + $0x34] sm:$0xf]
      %v272 = vld [vmem:[%s1] sm:$0x7]
      %v273 = vld [vmem:[%s2] sm:$0x1]
      %v275 = vlaneseq
      %v276 = vshrl.u32 %v275, 7
      %v277 = vsub.s32 0, %v276
      %v278 = vrot.slane %v273, %v277
      %v294 = vunpack.c.l.b16 %v258
      %v295 = vunpack.c.l.b16 %v259
      %v296 = vunpack.c.l.b16 %v260
      %v297 = vunpack.c.l.b16 %v261
      %v298 = vunpack.c.l.b16 %v262
      %v299 = vunpack.c.l.b16 %v263
      %v300 = vunpack.c.l.b16 %v264
      %v301 = vunpack.c.l.b16 %v265
      %v302 = vunpack.c.l.b16 %v266
      %v303 = vunpack.c.l.b16 %v267
      %v304 = vunpack.c.l.b16 %v268
      %v305 = vunpack.c.l.b16 %v269
      %v306 = vunpack.c.l.b16 %v270
      %v307 = vunpack.c.l.b16 %v271
      %v308 = vpack.c.b16 %v295, %v294
      %v309 = vpack.c.b16 %v297, %v296
      %v310 = vpack.c.b16 %v299, %v298
      %v311 = vpack.c.b16 %v301, %v300
      %v312 = vpack.c.b16 %v303, %v302
      %v313 = vpack.c.b16 %v305, %v304
      %v314 = vpack.c.b16 %v307, %v306
      %vm315 = vcmask 48128
      %v317 = vsel %vm315, %v308, 0
      %v320 = vsel %vm315, %v309, 0
      %v323 = vsel %vm315, %v310, 0
      %v326 = vsel %vm315, %v311, 0
      %v329 = vsel %vm315, %v312, 0
      %v332 = vsel %vm315, %v313, 0
      %v335 = vsel %vm315, %v314, 0
      %vm337 = vcmask 1042432
      %v339 = vsel %vm337, %v272, 0
      %341 = vmatprep.subr.bf16.mxu0 0
      %342 = vmatpush1.bf16.msra.mxu0 %v339
      %343 = vmatprep.subr.bf16.mxu0 0
      %344 = vmatpush1.bf16.msra.mxu0 0
      %345 = vmatprep.subr.bf16.mxu0 0
      %346 = vmatpush1.bf16.msra.mxu0 0
      %347 = vmatprep.subr.bf16.mxu0 0
      %348 = vmatpush1.bf16.msra.mxu0 0
      %349 = vmatprep.subr.bf16.mxu0 0
      %350 = vmatpush1.bf16.msra.mxu0 0
      %351 = vmatprep.subr.bf16.mxu0 0
      %352 = vmatpush1.bf16.msra.mxu0 0
      %353 = vmatprep.subr.bf16.mxu0 0
      %354 = vmatpush1.bf16.msra.mxu0 0
      %355 = vmatprep.subr.bf16.mxu0 0
      %356 = vmatpush1.bf16.msra.mxu0 0
      %357 = vmatprep.subr.bf16.mxu0 0
      %358 = vmatpush1.bf16.msra.mxu0 0
      %359 = vmatprep.subr.bf16.mxu0 0
      %360 = vmatpush1.bf16.msra.mxu0 0
      %361 = vmatprep.subr.bf16.mxu0 0
      %362 = vmatpush1.bf16.msra.mxu0 0
      %363 = vmatprep.subr.bf16.mxu0 0
      %364 = vmatpush1.bf16.msra.mxu0 0
      %365 = vmatprep.subr.bf16.mxu0 0
      %366 = vmatpush1.bf16.msra.mxu0 0
      %367 = vmatprep.subr.bf16.mxu0 0
      %368 = vmatpush1.bf16.msra.mxu0 0
      %369 = vmatprep.subr.bf16.mxu0 0
      %370 = vmatpush1.bf16.msra.mxu0 0
      %371 = vmatprep.subr.bf16.mxu0 0
      %372 = vmatpush1.bf16.msra.mxu0 0
      %373 = vmatprep.mubr.bf16.mxu0 0
      %374 = vmatmul.mubr.bf16.gmra.mrb[0].mxu0 %v317
      %v375 = vpop.f32.mrb[0].mxu0
      %v376 = vadd.f32 %v278, %v375
      %v377 = vpop.f32.mrb[0].mxu0
      %v378 = vpop.f32.mrb[0].mxu0
      %v379 = vadd.f32 %v278, %v378
      %v380 = vpop.f32.mrb[0].mxu0
      %381 = vmatprep.mubr.bf16.mxu0 0
      %382 = vmatmul.mubr.bf16.gmra.mrb[0].mxu0 %v320
      %v383 = vpop.f32.mrb[0].mxu0
      %v384 = vadd.f32 %v278, %v383
      %v385 = vpop.f32.mrb[0].mxu0
      %v386 = vpop.f32.mrb[0].mxu0
      %v387 = vadd.f32 %v278, %v386
      %v388 = vpop.f32.mrb[0].mxu0
      %389 = vmatprep.mubr.bf16.mxu0 0
      %390 = vmatmul.mubr.bf16.gmra.mrb[0].mxu0 %v323
      %v391 = vpop.f32.mrb[0].mxu0
      %v392 = vadd.f32 %v278, %v391
      %v393 = vpop.f32.mrb[0].mxu0
      %v394 = vpop.f32.mrb[0].mxu0
      %v395 = vadd.f32 %v278, %v394
      %v396 = vpop.f32.mrb[0].mxu0
      %397 = vmatprep.mubr.bf16.mxu0 0
      %398 = vmatmul.mubr.bf16.gmra.mrb[0].mxu0 %v326
      %v399 = vpop.f32.mrb[0].mxu0
      %v400 = vadd.f32 %v278, %v399
      %v401 = vpop.f32.mrb[0].mxu0
      %v402 = vpop.f32.mrb[0].mxu0
      %v403 = vadd.f32 %v278, %v402
      %v404 = vpop.f32.mrb[0].mxu0
      %405 = vmatprep.mubr.bf16.mxu0 0
      %406 = vmatmul.mubr.bf16.gmra.mrb[0].mxu0 %v329
      %v407 = vpop.f32.mrb[0].mxu0
      %v408 = vadd.f32 %v278, %v407
      %v409 = vpop.f32.mrb[0].mxu0
      %v410 = vpop.f32.mrb[0].mxu0
      %v411 = vadd.f32 %v278, %v410
      %v412 = vpop.f32.mrb[0].mxu0
      %413 = vmatprep.mubr.bf16.mxu0 0
      %414 = vmatmul.mubr.bf16.gmra.mrb[0].mxu0 %v332
      %v415 = vpop.f32.mrb[0].mxu0
      %v416 = vadd.f32 %v278, %v415
      %v417 = vpop.f32.mrb[0].mxu0
      %v418 = vpop.f32.mrb[0].mxu0
      %v419 = vadd.f32 %v278, %v418
      %v420 = vpop.f32.mrb[0].mxu0
      %421 = vmatprep.mubr.bf16.mxu0 0
      %422 = vmatmul.mubr.bf16.gmra.mrb[0].mxu0 %v335
      %v423 = vpop.f32.mrb[0].mxu0
      %v424 = vadd.f32 %v278, %v423
      %v425 = vpop.f32.mrb[0].mxu0
      %v426 = vpop.f32.mrb[0].mxu0
      %v427 = vadd.f32 %v278, %v426
      %v428 = vpop.f32.mrb[0].mxu0
      %429 = vdwg.mxu0
      %v430 = vmax.f32 %v376, 0.0
      %v431 = vmax.f32 %v379, 0.0
      %v432 = vmax.f32 %v384, 0.0
      %v433 = vmax.f32 %v387, 0.0
      %v434 = vmax.f32 %v392, 0.0
      %v435 = vmax.f32 %v395, 0.0
      %v436 = vmax.f32 %v400, 0.0
      %v437 = vmax.f32 %v403, 0.0
      %v438 = vmax.f32 %v408, 0.0
      %v439 = vmax.f32 %v411, 0.0
      %v440 = vmax.f32 %v416, 0.0
      %v441 = vmax.f32 %v419, 0.0
      %v442 = vmax.f32 %v424, 0.0
      %v443 = vmax.f32 %v427, 0.0
      %v444 = vpack.c.bf16 %v431, %v430
      %v445 = vpack.c.bf16 %v433, %v432
      %v446 = vpack.c.bf16 %v435, %v434
      %v447 = vpack.c.bf16 %v437, %v436
      %v448 = vpack.c.bf16 %v439, %v438
      %v449 = vpack.c.bf16 %v441, %v440
      %v450 = vpack.c.bf16 %v443, %v442
      %v451 = vld [vmem:[%s3] sm:$0xf]
      %v452 = vld [vmem:[%s3 + $0x4] sm:$0xf]
      %v453 = vld [vmem:[%s3 + $0x8] sm:$0xf]
      %v454 = vld [vmem:[%s3 + $0xc] sm:$0xf]
      %v455 = vld [vmem:[%s3 + $0x10] sm:$0xf]
      %v456 = vld [vmem:[%s3 + $0x14] sm:$0xf]
      %v457 = vld [vmem:[%s3 + $0x18] sm:$0xf]
      %v458 = vld [vmem:[%s3 + $0x1c] sm:$0xf]
      %v459 = vld [vmem:[%s4] sm:$0x1]
      %v461 = vlaneseq
      %v462 = vshrl.u32 %v461, 7
      %v463 = vsub.s32 0, %v462
      %v464 = vrot.slane %v459, %v463
      %v474 = vunpack.c.l.b16 %v451
      %v475 = vunpack.c.l.b16 %v452
      %v476 = vunpack.c.l.b16 %v453
      %v477 = vunpack.c.l.b16 %v454
      %v478 = vunpack.c.l.b16 %v455
      %v479 = vunpack.c.l.b16 %v456
      %v480 = vunpack.c.l.b16 %v457
      %v481 = vunpack.c.l.b16 %v458
      %v482 = vpack.c.b16 %v475, %v474
      %v483 = vpack.c.b16 %v477, %v476
      %v484 = vpack.c.b16 %v479, %v478
      %v485 = vpack.c.b16 %v481, %v480
      %vm490 = vcmask 523264
      %v492 = vsel %vm490, %v444, 0
      %v495 = vsel %vm490, %v445, 0
      %v498 = vsel %vm490, %v446, 0
      %v501 = vsel %vm490, %v447, 0
      %v504 = vsel %vm490, %v448, 0
      %v507 = vsel %vm490, %v449, 0
      %v510 = vsel %vm490, %v450, 0
      %512 = vmatprep.subr.bf16.mxu0 0
      %513 = vmatpush1.bf16.msra.mxu0 %v482
      %514 = vmatprep.subr.bf16.mxu0 0
      %515 = vmatpush1.bf16.msra.mxu0 %v483
      %516 = vmatprep.subr.bf16.mxu0 0
      %517 = vmatpush1.bf16.msra.mxu0 %v484
      %518 = vmatprep.subr.bf16.mxu0 0
      %519 = vmatpush1.bf16.msra.mxu0 %v485
      %520 = vmatprep.subr.bf16.mxu0 0
      %521 = vmatpush1.bf16.msra.mxu0 0
      %522 = vmatprep.subr.bf16.mxu0 0
      %523 = vmatpush1.bf16.msra.mxu0 0
      %524 = vmatprep.subr.bf16.mxu0 0
      %525 = vmatpush1.bf16.msra.mxu0 0
      %526 = vmatprep.subr.bf16.mxu0 0
      %527 = vmatpush1.bf16.msra.mxu0 0
      %528 = vmatprep.subr.bf16.mxu0 0
      %529 = vmatpush1.bf16.msra.mxu0 0
      %530 = vmatprep.subr.bf16.mxu0 0
      %531 = vmatpush1.bf16.msra.mxu0 0
      %532 = vmatprep.subr.bf16.mxu0 0
      %533 = vmatpush1.bf16.msra.mxu0 0
      %534 = vmatprep.subr.bf16.mxu0 0
      %535 = vmatpush1.bf16.msra.mxu0 0
      %536 = vmatprep.subr.bf16.mxu0 0
      %537 = vmatpush1.bf16.msra.mxu0 0
      %538 = vmatprep.subr.bf16.mxu0 0
      %539 = vmatpush1.bf16.msra.mxu0 0
      %540 = vmatprep.subr.bf16.mxu0 0
      %541 = vmatpush1.bf16.msra.mxu0 0
      %542 = vmatprep.subr.bf16.mxu0 0
      %543 = vmatpush1.bf16.msra.mxu0 0
      %544 = vmatprep.mubr.bf16.mxu0 0
      %545 = vmatmul.mubr.bf16.gmra.mrb[0].mxu0 %v492
      %v546 = vpop.f32.mrb[0].mxu0
      %v547 = vadd.f32 %v464, %v546
      %v548 = vpop.f32.mrb[0].mxu0
      %v549 = vpop.f32.mrb[0].mxu0
      %v550 = vadd.f32 %v464, %v549
      %v551 = vpop.f32.mrb[0].mxu0
      %552 = vmatprep.mubr.bf16.mxu0 0
      %553 = vmatmul.mubr.bf16.gmra.mrb[0].mxu0 %v495
      %v554 = vpop.f32.mrb[0].mxu0
      %v555 = vadd.f32 %v464, %v554
      %v556 = vpop.f32.mrb[0].mxu0
      %v557 = vpop.f32.mrb[0].mxu0
      %v558 = vadd.f32 %v464, %v557
      %v559 = vpop.f32.mrb[0].mxu0
      %560 = vmatprep.mubr.bf16.mxu0 0
      %561 = vmatmul.mubr.bf16.gmra.mrb[0].mxu0 %v498
      %v562 = vpop.f32.mrb[0].mxu0
      %v563 = vadd.f32 %v464, %v562
      %v564 = vpop.f32.mrb[0].mxu0
      %v565 = vpop.f32.mrb[0].mxu0
      %v566 = vadd.f32 %v464, %v565
      %v567 = vpop.f32.mrb[0].mxu0
      %568 = vmatprep.mubr.bf16.mxu0 0
      %569 = vmatmul.mubr.bf16.gmra.mrb[0].mxu0 %v501
      %v570 = vpop.f32.mrb[0].mxu0
      %v571 = vadd.f32 %v464, %v570
      %v572 = vpop.f32.mrb[0].mxu0
      %v573 = vpop.f32.mrb[0].mxu0
      %v574 = vadd.f32 %v464, %v573
      %v575 = vpop.f32.mrb[0].mxu0
      %576 = vmatprep.mubr.bf16.mxu0 0
      %577 = vmatmul.mubr.bf16.gmra.mrb[0].mxu0 %v504
      %v578 = vpop.f32.mrb[0].mxu0
      %v579 = vadd.f32 %v464, %v578
      %v580 = vpop.f32.mrb[0].mxu0
      %v581 = vpop.f32.mrb[0].mxu0
      %v582 = vadd.f32 %v464, %v581
      %v583 = vpop.f32.mrb[0].mxu0
      %584 = vmatprep.mubr.bf16.mxu0 0
      %585 = vmatmul.mubr.bf16.gmra.mrb[0].mxu0 %v507
      %v586 = vpop.f32.mrb[0].mxu0
      %v587 = vadd.f32 %v464, %v586
      %v588 = vpop.f32.mrb[0].mxu0
      %v589 = vpop.f32.mrb[0].mxu0
      %v590 = vadd.f32 %v464, %v589
      %v591 = vpop.f32.mrb[0].mxu0
      %592 = vmatprep.mubr.bf16.mxu0 0
      %593 = vmatmul.mubr.bf16.gmra.mrb[0].mxu0 %v510
      %v594 = vpop.f32.mrb[0].mxu0
      %v595 = vadd.f32 %v464, %v594
      %v596 = vpop.f32.mrb[0].mxu0
      %v597 = vpop.f32.mrb[0].mxu0
      %v598 = vadd.f32 %v464, %v597
      %v599 = vpop.f32.mrb[0].mxu0
      %600 = vdwg.mxu0
      %v601 = vmax.f32 %v547, 0.0
      %v602 = vmax.f32 %v550, 0.0
      %v603 = vmax.f32 %v555, 0.0
      %v604 = vmax.f32 %v558, 0.0
      %v605 = vmax.f32 %v563, 0.0
      %v606 = vmax.f32 %v566, 0.0
      %v607 = vmax.f32 %v571, 0.0
      %v608 = vmax.f32 %v574, 0.0
      %v609 = vmax.f32 %v579, 0.0
      %v610 = vmax.f32 %v582, 0.0
      %v611 = vmax.f32 %v587, 0.0
      %v612 = vmax.f32 %v590, 0.0
      %v613 = vmax.f32 %v595, 0.0
      %v614 = vmax.f32 %v598, 0.0
      %v615 = vlaneseq
      %v616 = vshrl.u32 %v615, 7
      %v617 = vadd.s32 %v616, 8
      %v618 = vadd.s32 %v616, 16
      %v619 = vadd.s32 %v616, 24
      %v620 = vadd.s32 %v616, 32
      %v621 = vadd.s32 %v616, 40
      %v622 = vadd.s32 %v616, 48
      %v623 = vadd.s32 %v616, 56
      %v624 = vadd.s32 %v616, 64
      %v625 = vadd.s32 %v616, 72
      %v626 = vadd.s32 %v616, 80
      %v627 = vadd.s32 %v616, 88
      %v628 = vadd.s32 %v616, 96
      %v629 = vadd.s32 %v616, 104
      %s630 = smul.u32 %s21, 112
      %v631 = vstv %s630
      %v632 = vadd.s32 %v616, %v631
      %v633 = vadd.s32 %v617, %v631
      %v634 = vadd.s32 %v618, %v631
      %v635 = vadd.s32 %v619, %v631
      %v636 = vadd.s32 %v620, %v631
      %v637 = vadd.s32 %v621, %v631
      %v638 = vadd.s32 %v622, %v631
      %v639 = vadd.s32 %v623, %v631
      %v640 = vadd.s32 %v624, %v631
      %v641 = vadd.s32 %v625, %v631
      %v642 = vadd.s32 %v626, %v631
      %v643 = vadd.s32 %v627, %v631
      %v644 = vadd.s32 %v628, %v631
      %v645 = vadd.s32 %v629, %v631
      %vm646 = vcmp.lt.s32.totalorder %v632, 100
      %vm647 = vcmp.lt.s32.totalorder %v633, 100
      %vm648 = vcmp.lt.s32.totalorder %v634, 100
      %vm649 = vcmp.lt.s32.totalorder %v635, 100
      %vm650 = vcmp.lt.s32.totalorder %v636, 100
      %vm651 = vcmp.lt.s32.totalorder %v637, 100
      %vm652 = vcmp.lt.s32.totalorder %v638, 100
      %vm653 = vcmp.lt.s32.totalorder %v639, 100
      %vm654 = vcmp.lt.s32.totalorder %v640, 100
      %vm655 = vcmp.lt.s32.totalorder %v641, 100
      %vm656 = vcmp.lt.s32.totalorder %v642, 100
      %vm657 = vcmp.lt.s32.totalorder %v643, 100
      %vm658 = vcmp.lt.s32.totalorder %v644, 100
      %vm659 = vcmp.lt.s32.totalorder %v645, 100
      %v660 = vsel %vm646, %v601, 0.0
      %v661 = vsel %vm647, %v602, 0.0
      %v662 = vsel %vm648, %v603, 0.0
      %v663 = vsel %vm649, %v604, 0.0
      %v664 = vsel %vm650, %v605, 0.0
      %v665 = vsel %vm651, %v606, 0.0
      %v666 = vsel %vm652, %v607, 0.0
      %v667 = vsel %vm653, %v608, 0.0
      %v668 = vsel %vm654, %v609, 0.0
      %v669 = vsel %vm655, %v610, 0.0
      %v670 = vsel %vm656, %v611, 0.0
      %v671 = vsel %vm657, %v612, 0.0
      %v672 = vsel %vm658, %v613, 0.0
      %v673 = vsel %vm659, %v614, 0.0
      %v674 = vmax.f32 %v660, %v664
      %v675 = vmax.f32 %v661, %v665
      %v676 = vmax.f32 %v662, %v666
      %v677 = vmax.f32 %v663, %v667
      %v678 = vmax.f32 %v674, %v668
      %v679 = vmax.f32 %v675, %v669
      %v680 = vmax.f32 %v676, %v670
      %v681 = vmax.f32 %v677, %v671
      %v682 = vmax.f32 %v678, %v672
      %v683 = vmax.f32 %v679, %v673
      %v684 = vmax.f32 %v682, %v683
      %v685 = vmax.f32 %v680, %v681
      %v686 = vmax.f32 %v684, %v685
      %v687 = vrot.slane %v686, 4
      %v688 = vmax.f32 %v686, %v687
      %v689 = vrot.slane %v688, 2
      %v690 = vmax.f32 %v688, %v689
      %v691 = vrot.slane %v690, 1
      %v692 = vmax.f32 %v690, %v691
      %693 = vst [vmem:[%s256] sm:$0x1] %v692
      %p694 = scmp.lt.s32.totalorder %s20, 1
      %s695 = scalar_select %p694, %s20, 1
      %p696 = scmp.lt.s32.totalorder %s21, 0
      %s697 = scalar_select %p696, %s21, 0
      %s698 = sadd.s32 %s697, %s695
      %s699 = scalar_lea.vmem %s5, %s698
      // Predicated region
      $region41: #{scorenet_forward.2} parent=39 // pred_check
        %p700 = pneg %p160
      $region42: #{scorenet_forward.2} parent=39 // pred_check_branch
        %702 = sbr.rel (%p700) target = $region44
      $region43: #{scorenet_forward.2} parent=39 // pred_region
        _
      $region44: #{scorenet_forward.2} parent=39 // pred_fallthru
        _
    $region40: #{scorenet_forward.2} parent=5 // pred_fallthru
      _
    %p703 = scmp.le.s32.totalorder 2, %s11
    // Predicated region
    $region45: #{scorenet_forward.2} parent=5 // pred_check
      %p704 = pneg %p703
    $region46: #{scorenet_forward.2} parent=5 // pred_check_branch
      %706 = sbr.rel (%p704) target = $region48
    $region47: #{scorenet_forward.2} parent=5 // pred_region
      %s707 = ssub.s32 %s11, 2
      // Predicated region
      $region49: #{scorenet_forward.2} parent=47 // pred_check
        %p708 = pneg %p166
      $region50: #{scorenet_forward.2} parent=47 // pred_check_branch
        %710 = sbr.rel (%p708) target = $region52
      $region51: #{scorenet_forward.2} parent=47 // pred_region
        %p711 = scmp.lt.s32.totalorder %s22, 1
        %s712 = scalar_select %p711, %s22, 1
        %p713 = scmp.lt.s32.totalorder %s23, 0
        %s714 = scalar_select %p713, %s23, 0
        %s715 = sadd.s32 %s714, %s712
        %s716 = scalar_lea.vmem %s5, %s715
      $region52: #{scorenet_forward.2} parent=47 // pred_fallthru
        _
    $region48: #{scorenet_forward.2} parent=5 // pred_fallthru
      _
  $region6: #{scorenet_forward.2} parent=0 // loop_footer
    %s15 = sadd.s32 1, %s11
  $region7: #{scorenet_forward.2} parent=0 // loop_footer_branch
    %10 = sbr.rel target = $region3
  $region8: #{scorenet_forward.2} parent=0 // loop_exit
    _

// kernel: scorenet_forward.3
$region0: #{scorenet_forward.3}
  #allocation0 [shape = 'u32[]', space=smem, size = 0x4, offset = 0x4, fixed_abs, tag = 'smem constant byte address 0x4 - core index']
  #allocation1 [shape = 'u32[144,128]{1,0:T(1,128)}', space=vmem, size = 0x12000, scoped, tag = 'internal scratch']
  #allocation2 [shape = 'f32[1,1]{1,0:T(1,128)S(1)}', space=vmem, size = 0x200, scoped, tag = 'scoped memory for scorenet_forward.3']
  %s0 = inlined_call_operand.vmem [shape: bf16[2,112,6], index: 0, kind: input, shape index: {}]
  %s1 = inlined_call_operand.vmem [shape: f32[2,1,128], index: 1, kind: input, shape index: {}]
  %s2 = inlined_call_operand.vmem [shape: bf16[6,64], index: 2, kind: input, shape index: {}]
  %s3 = inlined_call_operand.vmem [shape: f32[1,64], index: 3, kind: input, shape index: {}]
  %s4 = inlined_call_operand.vmem [shape: bf16[64,128], index: 4, kind: input, shape index: {}]
  %s5 = inlined_call_operand.vmem [shape: f32[1,128], index: 5, kind: input, shape index: {}]
  %s6 = inlined_call_operand.vmem [shape: bf16[128,128], index: 6, kind: input, shape index: {}]
  %s7 = inlined_call_operand.vmem [shape: bf16[128,64], index: 7, kind: input, shape index: {}]
  %s8 = inlined_call_operand.vmem [shape: f32[1,64], index: 8, kind: input, shape index: {}]
  %s9 = inlined_call_operand.vmem [shape: bf16[1,64], index: 9, kind: input, shape index: {}]
  %s10 = inlined_call_operand.<no memory space> [shape: f32[1,1], index: 10, kind: input, shape index: {}]
  %s11 = inlined_call_operand.vmem [shape: bf16[2,112,128], index: 11, kind: output, shape index: {0}]
  %s12 = inlined_call_operand.vmem [shape: f32[2,1,112], index: 12, kind: output, shape index: {1}]
  %13 = xla_tuple %s11, %s12
  %s14 = sld [smem:[#allocation0]]
  $region85: #{scorenet_forward.3} parent=0
    _
  %s16 = ssub.s32 1, %s14
  %s17 = scalar_select 0, %s16, %s14
  %v18 = vstv %s10
  %19 = vst [vmem:[#allocation2] sm:$0x1] %v18
  loop: start=0, step=1, limit=4
  $region2: #{scorenet_forward.3} parent=0 // loop_pre_header
    _
  $region3: #{scorenet_forward.3} parent=0 // loop_header
    %s21 = sphi 0, %s25
    %p22 = scmp.ge.s32.totalorder %s21, 4
    %s28 = sphi 0, %s40
    %s29 = sphi 0, %s36
    %s30 = sphi 0, %s28
    %s31 = sphi 0, %s29
    %s32 = sphi 0, %s30
    %s33 = sphi 0, %s31
    %s45 = sphi 0, %s47
    %s48 = sphi 0, %s45
    %s49 = sphi 0, %s48
    %s65 = sphi 0, %s49
    %s71 = sphi 0, %s73
    %s74 = sphi 0, %s71
    %s75 = sphi 0, %s74
    %s91 = sphi 0, %s75
    %s95 = sphi 0, %s95
    %s97 = sphi 0, %s95
    %s98 = sphi 0, %s97
    %s112 = sphi 0, %s98
    %s116 = sphi 0, %s116
    %s118 = sphi 0, %s116
    %s119 = sphi 0, %s118
    %s133 = sphi 0, %s119
    %s137 = sphi 0, %s137
    %s139 = sphi 0, %s137
    %s140 = sphi 0, %s139
    %s154 = sphi 0, %s140
    %s158 = sphi 0, %s158
    %s160 = sphi 0, %s158
    %s161 = sphi 0, %s160
    %s175 = sphi 0, %s161
    %s179 = sphi 0, %s179
    %s181 = sphi 0, %s179
    %s182 = sphi 0, %s181
    %s196 = sphi 0, %s182
    %s200 = sphi 0, %s200
    %s202 = sphi 0, %s200
    %s203 = sphi 0, %s202
    %s217 = sphi 0, %s203
    %s221 = sphi 0, %s221
    %s223 = sphi 0, %s221
    %s224 = sphi 0, %s223
    %s238 = sphi 0, %s224
    %s242 = sphi 0, %s242
    %s244 = sphi 0, %s242
    %s245 = sphi 0, %s244
    %s259 = sphi 0, %s245
    %s263 = sphi 0, %s263
    %s265 = sphi 0, %s263
    %s266 = sphi 0, %s265
    %s280 = sphi 0, %s266
    %s288 = sphi 0, %s290
    %s291 = sphi 0, %s288
    %s292 = sphi 0, %s291
    %s308 = sphi 0, %s292
    %s316 = sphi 0, %s318
    %s319 = sphi 0, %s316
    %s320 = sphi 0, %s319
    %s336 = sphi 0, %s320
  $region4: #{scorenet_forward.3} parent=0 // loop_header_branch
    %24 = sbr.rel (%p22) target = $region8
  $region5: #{scorenet_forward.3} parent=0 // loop_body
    %s26 = ssub.s32 %s21, 1
    %s27 = ssub.s32 %s21, 2
    %s34 = sadd.s32 1, %s29
    %p35 = scmp.ge.s32.totalorder %s34, 1
    %s36 = scalar_select %p35, 0, %s34
    %s37 = sadd.s32 1, %s28
    %s38 = scalar_select %p35, %s37, %s28
    %p39 = scmp.ge.s32.totalorder %s38, 2
    %s40 = scalar_select %p39, 0, %s38
    %s41 = ssub.s32 %s28, %s40
    %s42 = ssub.s32 %s29, %s36
    %s43 = sor.u32 %s41, %s42
    %p44 = scmp.eq.s32.totalorder %s43, 0
    %s46 = sadd.s32 %s45, 1
    %s47 = scalar_select %p44, %s45, %s46
    %p50 = pneg %p44
    %p51 = scmp.eq.s32.totalorder %s21, 1
    %p52 = por %p50, %p51
    %p53 = scmp.ne.s32.totalorder %s45, %s48
    %p54 = scmp.eq.s32.totalorder %s21, 0
    %p55 = por %p53, %p54
    %p56 = scmp.ne.s32.totalorder %s45, %s48
    %p57 = scmp.eq.s32.totalorder %s26, 1
    %p58 = por %p56, %p57
    %p59 = scmp.ne.s32.totalorder %s48, %s49
    %p60 = scmp.eq.s32.totalorder %s26, 0
    %p61 = por %p59, %p60
    %p62 = scmp.ne.s32.totalorder %s48, %s49
    %p63 = scmp.eq.s32.totalorder %s27, 1
    %p64 = por %p62, %p63
    %p66 = scmp.ne.s32.totalorder %s49, %s65
    %p67 = scmp.eq.s32.totalorder %s27, 0
    %p68 = por %p66, %p67
    %s69 = ssub.s32 %s28, %s40
    %p70 = scmp.eq.s32.totalorder %s69, 0
    %s72 = sadd.s32 %s71, 1
    %s73 = scalar_select %p70, %s71, %s72
    %p76 = pneg %p70
    %p77 = scmp.eq.s32.totalorder %s21, 1
    %p78 = por %p76, %p77
    %p79 = scmp.ne.s32.totalorder %s71, %s74
    %p80 = scmp.eq.s32.totalorder %s21, 0
    %p81 = por %p79, %p80
    %p82 = scmp.ne.s32.totalorder %s71, %s74
    %p83 = scmp.eq.s32.totalorder %s26, 1
    %p84 = por %p82, %p83
    %p85 = scmp.ne.s32.totalorder %s74, %s75
    %p86 = scmp.eq.s32.totalorder %s26, 0
    %p87 = por %p85, %p86
    %p88 = scmp.ne.s32.totalorder %s74, %s75
    %p89 = scmp.eq.s32.totalorder %s27, 1
    %p90 = por %p88, %p89
    %p92 = scmp.ne.s32.totalorder %s75, %s91
    %p93 = scmp.eq.s32.totalorder %s27, 0
    %p94 = por %p92, %p93
    %s96 = sadd.s32 %s95, 1
    %p99 = scmp.eq.s32.totalorder %s21, 1
    %p100 = scmp.ne.s32.totalorder %s95, %s97
    %p101 = scmp.eq.s32.totalorder %s21, 0
    %p102 = por %p100, %p101
    %p103 = scmp.ne.s32.totalorder %s95, %s97
    %p104 = scmp.eq.s32.totalorder %s26, 1
    %p105 = por %p103, %p104
    %p106 = scmp.ne.s32.totalorder %s97, %s98
    %p107 = scmp.eq.s32.totalorder %s26, 0
    %p108 = por %p106, %p107
    %p109 = scmp.ne.s32.totalorder %s97, %s98
    %p110 = scmp.eq.s32.totalorder %s27, 1
    %p111 = por %p109, %p110
    %p113 = scmp.ne.s32.totalorder %s98, %s112
    %p114 = scmp.eq.s32.totalorder %s27, 0
    %p115 = por %p113, %p114
    %s117 = sadd.s32 %s116, 1
    %p120 = scmp.eq.s32.totalorder %s21, 1
    %p121 = scmp.ne.s32.totalorder %s116, %s118
    %p122 = scmp.eq.s32.totalorder %s21, 0
    %p123 = por %p121, %p122
    %p124 = scmp.ne.s32.totalorder %s116, %s118
    %p125 = scmp.eq.s32.totalorder %s26, 1
    %p126 = por %p124, %p125
    %p127 = scmp.ne.s32.totalorder %s118, %s119
    %p128 = scmp.eq.s32.totalorder %s26, 0
    %p129 = por %p127, %p128
    %p130 = scmp.ne.s32.totalorder %s118, %s119
    %p131 = scmp.eq.s32.totalorder %s27, 1
    %p132 = por %p130, %p131
    %p134 = scmp.ne.s32.totalorder %s119, %s133
    %p135 = scmp.eq.s32.totalorder %s27, 0
    %p136 = por %p134, %p135
    %s138 = sadd.s32 %s137, 1
    %p141 = scmp.eq.s32.totalorder %s21, 1
    %p142 = scmp.ne.s32.totalorder %s137, %s139
    %p143 = scmp.eq.s32.totalorder %s21, 0
    %p144 = por %p142, %p143
    %p145 = scmp.ne.s32.totalorder %s137, %s139
    %p146 = scmp.eq.s32.totalorder %s26, 1
    %p147 = por %p145, %p146
    %p148 = scmp.ne.s32.totalorder %s139, %s140
    %p149 = scmp.eq.s32.totalorder %s26, 0
    %p150 = por %p148, %p149
    %p151 = scmp.ne.s32.totalorder %s139, %s140
    %p152 = scmp.eq.s32.totalorder %s27, 1
    %p153 = por %p151, %p152
    %p155 = scmp.ne.s32.totalorder %s140, %s154
    %p156 = scmp.eq.s32.totalorder %s27, 0
    %p157 = por %p155, %p156
    %s159 = sadd.s32 %s158, 1
    %p162 = scmp.eq.s32.totalorder %s21, 1
    %p163 = scmp.ne.s32.totalorder %s158, %s160
    %p164 = scmp.eq.s32.totalorder %s21, 0
    %p165 = por %p163, %p164
    %p166 = scmp.ne.s32.totalorder %s158, %s160
    %p167 = scmp.eq.s32.totalorder %s26, 1
    %p168 = por %p166, %p167
    %p169 = scmp.ne.s32.totalorder %s160, %s161
    %p170 = scmp.eq.s32.totalorder %s26, 0
    %p171 = por %p169, %p170
    %p172 = scmp.ne.s32.totalorder %s160, %s161
    %p173 = scmp.eq.s32.totalorder %s27, 1
    %p174 = por %p172, %p173
    %p176 = scmp.ne.s32.totalorder %s161, %s175
    %p177 = scmp.eq.s32.totalorder %s27, 0
    %p178 = por %p176, %p177
    %s180 = sadd.s32 %s179, 1
    %p183 = scmp.eq.s32.totalorder %s21, 1
    %p184 = scmp.ne.s32.totalorder %s179, %s181
    %p185 = scmp.eq.s32.totalorder %s21, 0
    %p186 = por %p184, %p185
    %p187 = scmp.ne.s32.totalorder %s179, %s181
    %p188 = scmp.eq.s32.totalorder %s26, 1
    %p189 = por %p187, %p188
    %p190 = scmp.ne.s32.totalorder %s181, %s182
    %p191 = scmp.eq.s32.totalorder %s26, 0
    %p192 = por %p190, %p191
    %p193 = scmp.ne.s32.totalorder %s181, %s182
    %p194 = scmp.eq.s32.totalorder %s27, 1
    %p195 = por %p193, %p194
    %p197 = scmp.ne.s32.totalorder %s182, %s196
    %p198 = scmp.eq.s32.totalorder %s27, 0
    %p199 = por %p197, %p198
    %s201 = sadd.s32 %s200, 1
    %p204 = scmp.eq.s32.totalorder %s21, 1
    %p205 = scmp.ne.s32.totalorder %s200, %s202
    %p206 = scmp.eq.s32.totalorder %s21, 0
    %p207 = por %p205, %p206
    %p208 = scmp.ne.s32.totalorder %s200, %s202
    %p209 = scmp.eq.s32.totalorder %s26, 1
    %p210 = por %p208, %p209
    %p211 = scmp.ne.s32.totalorder %s202, %s203
    %p212 = scmp.eq.s32.totalorder %s26, 0
    %p213 = por %p211, %p212
    %p214 = scmp.ne.s32.totalorder %s202, %s203
    %p215 = scmp.eq.s32.totalorder %s27, 1
    %p216 = por %p214, %p215
    %p218 = scmp.ne.s32.totalorder %s203, %s217
    %p219 = scmp.eq.s32.totalorder %s27, 0
    %p220 = por %p218, %p219
    %s222 = sadd.s32 %s221, 1
    %p225 = scmp.eq.s32.totalorder %s21, 1
    %p226 = scmp.ne.s32.totalorder %s221, %s223
    %p227 = scmp.eq.s32.totalorder %s21, 0
    %p228 = por %p226, %p227
    %p229 = scmp.ne.s32.totalorder %s221, %s223
    %p230 = scmp.eq.s32.totalorder %s26, 1
    %p231 = por %p229, %p230
    %p232 = scmp.ne.s32.totalorder %s223, %s224
    %p233 = scmp.eq.s32.totalorder %s26, 0
    %p234 = por %p232, %p233
    %p235 = scmp.ne.s32.totalorder %s223, %s224
    %p236 = scmp.eq.s32.totalorder %s27, 1
    %p237 = por %p235, %p236
    %p239 = scmp.ne.s32.totalorder %s224, %s238
    %p240 = scmp.eq.s32.totalorder %s27, 0
    %p241 = por %p239, %p240
    %s243 = sadd.s32 %s242, 1
    %p246 = scmp.eq.s32.totalorder %s21, 1
    %p247 = scmp.ne.s32.totalorder %s242, %s244
    %p248 = scmp.eq.s32.totalorder %s21, 0
    %p249 = por %p247, %p248
    %p250 = scmp.ne.s32.totalorder %s242, %s244
    %p251 = scmp.eq.s32.totalorder %s26, 1
    %p252 = por %p250, %p251
    %p253 = scmp.ne.s32.totalorder %s244, %s245
    %p254 = scmp.eq.s32.totalorder %s26, 0
    %p255 = por %p253, %p254
    %p256 = scmp.ne.s32.totalorder %s244, %s245
    %p257 = scmp.eq.s32.totalorder %s27, 1
    %p258 = por %p256, %p257
    %p260 = scmp.ne.s32.totalorder %s245, %s259
    %p261 = scmp.eq.s32.totalorder %s27, 0
    %p262 = por %p260, %p261
    %s264 = sadd.s32 %s263, 1
    %p267 = scmp.eq.s32.totalorder %s21, 1
    %p268 = scmp.ne.s32.totalorder %s263, %s265
    %p269 = scmp.eq.s32.totalorder %s21, 0
    %p270 = por %p268, %p269
    %p271 = scmp.ne.s32.totalorder %s263, %s265
    %p272 = scmp.eq.s32.totalorder %s26, 1
    %p273 = por %p271, %p272
    %p274 = scmp.ne.s32.totalorder %s265, %s266
    %p275 = scmp.eq.s32.totalorder %s26, 0
    %p276 = por %p274, %p275
    %p277 = scmp.ne.s32.totalorder %s265, %s266
    %p278 = scmp.eq.s32.totalorder %s27, 1
    %p279 = por %p277, %p278
    %p281 = scmp.ne.s32.totalorder %s266, %s280
    %p282 = scmp.eq.s32.totalorder %s27, 0
    %p283 = por %p281, %p282
    %s284 = ssub.s32 %s28, %s40
    %s285 = ssub.s32 %s29, %s36
    %s286 = sor.u32 %s284, %s285
    %p287 = scmp.eq.s32.totalorder %s286, 0
    %s289 = sadd.s32 %s288, 1
    %s290 = scalar_select %p287, %s288, %s289
    %p293 = pneg %p287
    %p294 = scmp.eq.s32.totalorder %s21, 1
    %p295 = por %p293, %p294
    %p296 = scmp.ne.s32.totalorder %s288, %s291
    %p297 = scmp.eq.s32.totalorder %s21, 0
    %p298 = por %p296, %p297
    %p299 = scmp.ne.s32.totalorder %s288, %s291
    %p300 = scmp.eq.s32.totalorder %s26, 1
    %p301 = por %p299, %p300
    %p302 = scmp.ne.s32.totalorder %s291, %s292
    %p303 = scmp.eq.s32.totalorder %s26, 0
    %p304 = por %p302, %p303
    %p305 = scmp.ne.s32.totalorder %s291, %s292
    %p306 = scmp.eq.s32.totalorder %s27, 1
    %p307 = por %p305, %p306
    %p309 = scmp.ne.s32.totalorder %s292, %s308
    %p310 = scmp.eq.s32.totalorder %s27, 0
    %p311 = por %p309, %p310
    %s312 = ssub.s32 %s28, %s40
    %s313 = ssub.s32 %s29, %s36
    %s314 = sor.u32 %s312, %s313
    %p315 = scmp.eq.s32.totalorder %s314, 0
    %s317 = sadd.s32 %s316, 1
    %s318 = scalar_select %p315, %s316, %s317
    %p321 = pneg %p315
    %p322 = scmp.eq.s32.totalorder %s21, 1
    %p323 = por %p321, %p322
    %p324 = scmp.ne.s32.totalorder %s316, %s319
    %p325 = scmp.eq.s32.totalorder %s21, 0
    %p326 = por %p324, %p325
    %p327 = scmp.ne.s32.totalorder %s316, %s319
    %p328 = scmp.eq.s32.totalorder %s26, 1
    %p329 = por %p327, %p328
    %p330 = scmp.ne.s32.totalorder %s319, %s320
    %p331 = scmp.eq.s32.totalorder %s26, 0
    %p332 = por %p330, %p331
    %p333 = scmp.ne.s32.totalorder %s319, %s320
    %p334 = scmp.eq.s32.totalorder %s27, 1
    %p335 = por %p333, %p334
    %p337 = scmp.ne.s32.totalorder %s320, %s336
    %p338 = scmp.eq.s32.totalorder %s27, 0
    %p339 = por %p337, %p338
    %p340 = scmp.le.s32.totalorder 1, %s21
    %p341 = scmp.lt.s32.totalorder %s21, 3
    %p342 = pnand %p340, %p341
    %p343 = pneg %p342
    // Predicated region
    $region9: #{scorenet_forward.3} parent=5 // pred_check
      _
    $region10: #{scorenet_forward.3} parent=5 // pred_check_branch
      %345 = sbr.rel (%p342) target = $region12
    $region11: #{scorenet_forward.3} parent=5 // pred_region
      %s346 = ssub.s32 %s21, 1
      // Predicated region
      $region13: #{scorenet_forward.3} parent=11 // pred_check
        %p347 = pneg %p108
      $region14: #{scorenet_forward.3} parent=11 // pred_check_branch
        %349 = sbr.rel (%p347) target = $region16
      $region15: #{scorenet_forward.3} parent=11 // pred_region
        _
      $region16: #{scorenet_forward.3} parent=11 // pred_fallthru
        _
      // Predicated region
      $region17: #{scorenet_forward.3} parent=11 // pred_check
        %p350 = pneg %p129
      $region18: #{scorenet_forward.3} parent=11 // pred_check_branch
        %352 = sbr.rel (%p350) target = $region20
      $region19: #{scorenet_forward.3} parent=11 // pred_region
        _
      $region20: #{scorenet_forward.3} parent=11 // pred_fallthru
        _
      // Predicated region
      $region21: #{scorenet_forward.3} parent=11 // pred_check
        %p353 = pneg %p150
      $region22: #{scorenet_forward.3} parent=11 // pred_check_branch
        %355 = sbr.rel (%p353) target = $region24
      $region23: #{scorenet_forward.3} parent=11 // pred_region
        _
      $region24: #{scorenet_forward.3} parent=11 // pred_fallthru
        _
      // Predicated region
      $region25: #{scorenet_forward.3} parent=11 // pred_check
        %p356 = pneg %p171
      $region26: #{scorenet_forward.3} parent=11 // pred_check_branch
        %358 = sbr.rel (%p356) target = $region28
      $region27: #{scorenet_forward.3} parent=11 // pred_region
        _
      $region28: #{scorenet_forward.3} parent=11 // pred_fallthru
        _
      // Predicated region
      $region29: #{scorenet_forward.3} parent=11 // pred_check
        %p359 = pneg %p192
      $region30: #{scorenet_forward.3} parent=11 // pred_check_branch
        %361 = sbr.rel (%p359) target = $region32
      $region31: #{scorenet_forward.3} parent=11 // pred_region
        _
      $region32: #{scorenet_forward.3} parent=11 // pred_fallthru
        _
      // Predicated region
      $region33: #{scorenet_forward.3} parent=11 // pred_check
        %p362 = pneg %p213
      $region34: #{scorenet_forward.3} parent=11 // pred_check_branch
        %364 = sbr.rel (%p362) target = $region36
      $region35: #{scorenet_forward.3} parent=11 // pred_region
        _
      $region36: #{scorenet_forward.3} parent=11 // pred_fallthru
        _
      // Predicated region
      $region37: #{scorenet_forward.3} parent=11 // pred_check
        %p365 = pneg %p234
      $region38: #{scorenet_forward.3} parent=11 // pred_check_branch
        %367 = sbr.rel (%p365) target = $region40
      $region39: #{scorenet_forward.3} parent=11 // pred_region
        _
      $region40: #{scorenet_forward.3} parent=11 // pred_fallthru
        _
      // Predicated region
      $region41: #{scorenet_forward.3} parent=11 // pred_check
        %p368 = pneg %p255
      $region42: #{scorenet_forward.3} parent=11 // pred_check_branch
        %370 = sbr.rel (%p368) target = $region44
      $region43: #{scorenet_forward.3} parent=11 // pred_region
        _
      $region44: #{scorenet_forward.3} parent=11 // pred_fallthru
        _
      // Predicated region
      $region45: #{scorenet_forward.3} parent=11 // pred_check
        %p371 = pneg %p276
      $region46: #{scorenet_forward.3} parent=11 // pred_check_branch
        %373 = sbr.rel (%p371) target = $region48
      $region47: #{scorenet_forward.3} parent=11 // pred_region
        _
      $region48: #{scorenet_forward.3} parent=11 // pred_fallthru
        _
    $region12: #{scorenet_forward.3} parent=5 // pred_fallthru
      _
    %p374 = scmp.lt.s32.totalorder %s21, 2
    // Predicated region
    $region49: #{scorenet_forward.3} parent=5 // pred_check
      %p375 = pneg %p374
    $region50: #{scorenet_forward.3} parent=5 // pred_check_branch
      %377 = sbr.rel (%p375) target = $region52
    $region51: #{scorenet_forward.3} parent=5 // pred_region
      // Predicated region
      $region53: #{scorenet_forward.3} parent=51 // pred_check
        %p378 = pneg %p55
      $region54: #{scorenet_forward.3} parent=51 // pred_check_branch
        %380 = sbr.rel (%p378) target = $region56
      $region55: #{scorenet_forward.3} parent=51 // pred_region
        %s381 = smul.u32 14, %s29
        %p382 = scmp.lt.s32.totalorder %s28, 1
        %s383 = scalar_select %p382, %s28, 1
        %p384 = scmp.lt.s32.totalorder %s381, 13
        %s385 = scalar_select %p384, %s381, 13
        %s386 = smul.addr %s383, 14
        %s387 = sadd.s32 %s385, %s386
        %s388 = smul.addr %s387, 4
        %s389 = scalar_lea.vmem %s0, %s388
        %s390 = smul.u32 14, %s29
      $region56: #{scorenet_forward.3} parent=51 // pred_fallthru
        _
      // Predicated region
      $region57: #{scorenet_forward.3} parent=51 // pred_check
        %p391 = pneg %p81
      $region58: #{scorenet_forward.3} parent=51 // pred_check_branch
        %393 = sbr.rel (%p391) target = $region60
      $region59: #{scorenet_forward.3} parent=51 // pred_region
        %p394 = scmp.lt.s32.totalorder %s28, 1
        %s395 = scalar_select %p394, %s28, 1
        %s396 = scalar_lea.vmem %s1, %s395
      $region60: #{scorenet_forward.3} parent=51 // pred_fallthru
        _
    $region52: #{scorenet_forward.3} parent=5 // pred_fallthru
      _
    %p397 = scmp.le.s32.totalorder 1, %s21
    %p398 = scmp.lt.s32.totalorder %s21, 3
    %p399 = pnand %p397, %p398
    %p400 = pneg %p399
    // Predicated region
    $region61: #{scorenet_forward.3} parent=5 // pred_check
      _
    $region62: #{scorenet_forward.3} parent=5 // pred_check_branch
      %402 = sbr.rel (%p399) target = $region64
    $region63: #{scorenet_forward.3} parent=5 // pred_region
      %s403 = ssub.s32 %s21, 1
      %s404 = smul.u32 14, %s31
      %p405 = scmp.lt.s32.totalorder %s30, 1
      %s406 = scalar_select %p405, %s30, 1
      %p407 = scmp.lt.s32.totalorder %s404, 13
      %s408 = scalar_select %p407, %s404, 13
      %s409 = smul.addr %s406, 14
      %s410 = sadd.s32 %s408, %s409
      %s411 = smul.addr %s410, 4
      %s412 = scalar_lea.vmem %s0, %s411
      %p413 = pneg %p61
      %p414 = pneg %p58
      %p415 = scmp.lt.s32.totalorder %s30, 1
      %s416 = scalar_select %p415, %s30, 1
      %s417 = scalar_lea.vmem %s1, %s416
      %p418 = pneg %p87
      %p419 = pneg %p84
      %p420 = pneg %p108
      %p421 = pneg %p105
      %p422 = pneg %p129
      %p423 = pneg %p126
      %p424 = pneg %p150
      %p425 = pneg %p147
      %p426 = pneg %p171
      %p427 = pneg %p168
      %p428 = pneg %p192
      %p429 = pneg %p189
      %p430 = pneg %p213
      %p431 = pneg %p210
      %p432 = pneg %p234
      %p433 = pneg %p231
      %p434 = pneg %p255
      %p435 = pneg %p252
      %p436 = pneg %p276
      %p437 = pneg %p273
      %p438 = pneg %p304
      %p439 = pneg %p301
      %s440 = smul.u32 14, %s31
      %p441 = scmp.lt.s32.totalorder %s30, 1
      %s442 = scalar_select %p441, %s30, 1
      %p443 = scmp.lt.s32.totalorder %s440, 13
      %s444 = scalar_select %p443, %s440, 13
      %s445 = smul.addr %s442, 14
      %s446 = sadd.s32 %s444, %s445
      %s447 = smul.addr %s446, 4
      %s448 = scalar_lea.vmem %s11, %s447
      %p449 = pneg %p332
      %p450 = pneg %p329
      %p451 = scmp.lt.s32.totalorder %s30, 1
      %s452 = scalar_select %p451, %s30, 1
      %p453 = scmp.lt.s32.totalorder %s31, 0
      %s454 = scalar_select %p453, %s31, 0
      %s455 = sadd.s32 %s454, %s452
      %s456 = scalar_lea.vmem %s12, %s455
      %s457 = smul.u32 14, %s31
      %p458 = scmp.lt.s32.totalorder %s30, 1
      %s459 = scalar_select %p458, %s30, 1
      %p460 = scmp.lt.s32.totalorder %s457, 13
      %s461 = scalar_select %p460, %s457, 13
      %s462 = smul.addr %s459, 14
      %s463 = sadd.s32 %s461, %s462
      %s464 = smul.addr %s463, 4
      %s465 = scalar_lea.vmem %s0, %s464
      %s466 = smul.u32 14, %s31
      %p467 = scmp.lt.s32.totalorder %s30, 1
      %s468 = scalar_select %p467, %s30, 1
      %s469 = scalar_lea.vmem %s1, %s468
      %s470 = smul.u32 14, %s31
      %p471 = scmp.lt.s32.totalorder %s30, 1
      %s472 = scalar_select %p471, %s30, 1
      %p473 = scmp.lt.s32.totalorder %s470, 13
      %s474 = scalar_select %p473, %s470, 13
      %s475 = smul.addr %s472, 14
      %s476 = sadd.s32 %s474, %s475
      %s477 = smul.addr %s476, 4
      %s478 = scalar_lea.vmem %s11, %s477
      %s479 = smul.u32 14, %s31
      %p480 = scmp.lt.s32.totalorder %s30, 1
      %s481 = scalar_select %p480, %s30, 1
      %p482 = scmp.lt.s32.totalorder %s31, 0
      %s483 = scalar_select %p482, %s31, 0
      %s484 = sadd.s32 %s483, %s481
      %s485 = scalar_lea.vmem %s12, %s484
      %v487 = vld [vmem:[%s465] sm:$0xf]
      %v488 = vld [vmem:[%s465 + $0x4] sm:$0xf]
      %v489 = vld [vmem:[%s465 + $0x8] sm:$0xf]
      %v490 = vld [vmem:[%s465 + $0xc] sm:$0xf]
      %v491 = vld [vmem:[%s465 + $0x10] sm:$0xf]
      %v492 = vld [vmem:[%s465 + $0x14] sm:$0xf]
      %v493 = vld [vmem:[%s465 + $0x18] sm:$0xf]
      %v494 = vld [vmem:[%s465 + $0x1c] sm:$0xf]
      %v495 = vld [vmem:[%s465 + $0x20] sm:$0xf]
      %v496 = vld [vmem:[%s465 + $0x24] sm:$0xf]
      %v497 = vld [vmem:[%s465 + $0x28] sm:$0xf]
      %v498 = vld [vmem:[%s465 + $0x2c] sm:$0xf]
      %v499 = vld [vmem:[%s465 + $0x30] sm:$0xf]
      %v500 = vld [vmem:[%s465 + $0x34] sm:$0xf]
      %v501 = vld [vmem:[%s2] sm:$0x7]
      %v502 = vld [vmem:[%s3] sm:$0x1]
      %v504 = vlaneseq
      %v505 = vshrl.u32 %v504, 7
      %v506 = vsub.s32 0, %v505
      %v507 = vrot.slane %v502, %v506
      %v523 = vunpack.c.l.b16 %v487
      %v524 = vunpack.c.l.b16 %v488
      %v525 = vunpack.c.l.b16 %v489
      %v526 = vunpack.c.l.b16 %v490
      %v527 = vunpack.c.l.b16 %v491
      %v528 = vunpack.c.l.b16 %v492
      %v529 = vunpack.c.l.b16 %v493
      %v530 = vunpack.c.l.b16 %v494
      %v531 = vunpack.c.l.b16 %v495
      %v532 = vunpack.c.l.b16 %v496
      %v533 = vunpack.c.l.b16 %v497
      %v534 = vunpack.c.l.b16 %v498
      %v535 = vunpack.c.l.b16 %v499
      %v536 = vunpack.c.l.b16 %v500
      %v537 = vpack.c.b16 %v524, %v523
      %v538 = vpack.c.b16 %v526, %v525
      %v539 = vpack.c.b16 %v528, %v527
      %v540 = vpack.c.b16 %v530, %v529
      %v541 = vpack.c.b16 %v532, %v531
      %v542 = vpack.c.b16 %v534, %v533
      %v543 = vpack.c.b16 %v536, %v535
      %vm544 = vcmask 48128
      %v546 = vsel %vm544, %v537, 0
      %v549 = vsel %vm544, %v538, 0
      %v552 = vsel %vm544, %v539, 0
      %v555 = vsel %vm544, %v540, 0
      %v558 = vsel %vm544, %v541, 0
      %v561 = vsel %vm544, %v542, 0
      %v564 = vsel %vm544, %v543, 0
      %vm566 = vcmask 1042432
      %v568 = vsel %vm566, %v501, 0
      %570 = vmatprep.subr.bf16.mxu0 0
      %571 = vmatpush1.bf16.msra.mxu0 %v568
      %572 = vmatprep.subr.bf16.mxu0 0
      %573 = vmatpush1.bf16.msra.mxu0 0
      %574 = vmatprep.subr.bf16.mxu0 0
      %575 = vmatpush1.bf16.msra.mxu0 0
      %576 = vmatprep.subr.bf16.mxu0 0
      %577 = vmatpush1.bf16.msra.mxu0 0
      %578 = vmatprep.subr.bf16.mxu0 0
      %579 = vmatpush1.bf16.msra.mxu0 0
      %580 = vmatprep.subr.bf16.mxu0 0
      %581 = vmatpush1.bf16.msra.mxu0 0
      %582 = vmatprep.subr.bf16.mxu0 0
      %583 = vmatpush1.bf16.msra.mxu0 0
      %584 = vmatprep.subr.bf16.mxu0 0
      %585 = vmatpush1.bf16.msra.mxu0 0
      %586 = vmatprep.subr.bf16.mxu0 0
      %587 = vmatpush1.bf16.msra.mxu0 0
      %588 = vmatprep.subr.bf16.mxu0 0
      %589 = vmatpush1.bf16.msra.mxu0 0
      %590 = vmatprep.subr.bf16.mxu0 0
      %591 = vmatpush1.bf16.msra.mxu0 0
      %592 = vmatprep.subr.bf16.mxu0 0
      %593 = vmatpush1.bf16.msra.mxu0 0
      %594 = vmatprep.subr.bf16.mxu0 0
      %595 = vmatpush1.bf16.msra.mxu0 0
      %596 = vmatprep.subr.bf16.mxu0 0
      %597 = vmatpush1.bf16.msra.mxu0 0
      %598 = vmatprep.subr.bf16.mxu0 0
      %599 = vmatpush1.bf16.msra.mxu0 0
      %600 = vmatprep.subr.bf16.mxu0 0
      %601 = vmatpush1.bf16.msra.mxu0 0
      %602 = vmatprep.mubr.bf16.mxu0 0
      %603 = vmatmul.mubr.bf16.gmra.mrb[0].mxu0 %v546
      %v604 = vpop.f32.mrb[0].mxu0
      %v605 = vadd.f32 %v507, %v604
      %v606 = vpop.f32.mrb[0].mxu0
      %v607 = vpop.f32.mrb[0].mxu0
      %v608 = vadd.f32 %v507, %v607
      %v609 = vpop.f32.mrb[0].mxu0
      %610 = vmatprep.mubr.bf16.mxu0 0
      %611 = vmatmul.mubr.bf16.gmra.mrb[0].mxu0 %v549
      %v612 = vpop.f32.mrb[0].mxu0
      %v613 = vadd.f32 %v507, %v612
      %v614 = vpop.f32.mrb[0].mxu0
      %v615 = vpop.f32.mrb[0].mxu0
      %v616 = vadd.f32 %v507, %v615
      %v617 = vpop.f32.mrb[0].mxu0
      %618 = vmatprep.mubr.bf16.mxu0 0
      %619 = vmatmul.mubr.bf16.gmra.mrb[0].mxu0 %v552
      %v620 = vpop.f32.mrb[0].mxu0
      %v621 = vadd.f32 %v507, %v620
      %v622 = vpop.f32.mrb[0].mxu0
      %v623 = vpop.f32.mrb[0].mxu0
      %v624 = vadd.f32 %v507, %v623
      %v625 = vpop.f32.mrb[0].mxu0
      %626 = vmatprep.mubr.bf16.mxu0 0
      %627 = vmatmul.mubr.bf16.gmra.mrb[0].mxu0 %v555
      %v628 = vpop.f32.mrb[0].mxu0
      %v629 = vadd.f32 %v507, %v628
      %v630 = vpop.f32.mrb[0].mxu0
      %v631 = vpop.f32.mrb[0].mxu0
      %v632 = vadd.f32 %v507, %v631
      %v633 = vpop.f32.mrb[0].mxu0
      %634 = vmatprep.mubr.bf16.mxu0 0
      %635 = vmatmul.mubr.bf16.gmra.mrb[0].mxu0 %v558
      %v636 = vpop.f32.mrb[0].mxu0
      %v637 = vadd.f32 %v507, %v636
      %v638 = vpop.f32.mrb[0].mxu0
      %v639 = vpop.f32.mrb[0].mxu0
      %v640 = vadd.f32 %v507, %v639
      %v641 = vpop.f32.mrb[0].mxu0
      %642 = vmatprep.mubr.bf16.mxu0 0
      %643 = vmatmul.mubr.bf16.gmra.mrb[0].mxu0 %v561
      %v644 = vpop.f32.mrb[0].mxu0
      %v645 = vadd.f32 %v507, %v644
      %v646 = vpop.f32.mrb[0].mxu0
      %v647 = vpop.f32.mrb[0].mxu0
      %v648 = vadd.f32 %v507, %v647
      %v649 = vpop.f32.mrb[0].mxu0
      %650 = vmatprep.mubr.bf16.mxu0 0
      %651 = vmatmul.mubr.bf16.gmra.mrb[0].mxu0 %v564
      %v652 = vpop.f32.mrb[0].mxu0
      %v653 = vadd.f32 %v507, %v652
      %v654 = vpop.f32.mrb[0].mxu0
      %v655 = vpop.f32.mrb[0].mxu0
      %v656 = vadd.f32 %v507, %v655
      %v657 = vpop.f32.mrb[0].mxu0
      %658 = vdwg.mxu0
      %v659 = vmax.f32 %v605, 0.0
      %v660 = vmax.f32 %v608, 0.0
      %v661 = vmax.f32 %v613, 0.0
      %v662 = vmax.f32 %v616, 0.0
      %v663 = vmax.f32 %v621, 0.0
      %v664 = vmax.f32 %v624, 0.0
      %v665 = vmax.f32 %v629, 0.0
      %v666 = vmax.f32 %v632, 0.0
      %v667 = vmax.f32 %v637, 0.0
      %v668 = vmax.f32 %v640, 0.0
      %v669 = vmax.f32 %v645, 0.0
      %v670 = vmax.f32 %v648, 0.0
      %v671 = vmax.f32 %v653, 0.0
      %v672 = vmax.f32 %v656, 0.0
      %v673 = vpack.c.bf16 %v660, %v659
      %v674 = vpack.c.bf16 %v662, %v661
      %v675 = vpack.c.bf16 %v664, %v663
      %v676 = vpack.c.bf16 %v666, %v665
      %v677 = vpack.c.bf16 %v668, %v667
      %v678 = vpack.c.bf16 %v670, %v669
      %v679 = vpack.c.bf16 %v672, %v671
      %v680 = vld [vmem:[%s4] sm:$0xf]
      %v681 = vld [vmem:[%s4 + $0x4] sm:$0xf]
      %v682 = vld [vmem:[%s4 + $0x8] sm:$0xf]
      %v683 = vld [vmem:[%s4 + $0xc] sm:$0xf]
      %v684 = vld [vmem:[%s4 + $0x10] sm:$0xf]
      %v685 = vld [vmem:[%s4 + $0x14] sm:$0xf]
      %v686 = vld [vmem:[%s4 + $0x18] sm:$0xf]
      %v687 = vld [vmem:[%s4 + $0x1c] sm:$0xf]
      %v688 = vld [vmem:[%s5] sm:$0x1]
      %v690 = vlaneseq
      %v691 = vshrl.u32 %v690, 7
      %v692 = vsub.s32 0, %v691
      %v693 = vrot.slane %v688, %v692
      %v703 = vunpack.c.l.b16 %v680
      %v704 = vunpack.c.l.b16 %v681
      %v705 = vunpack.c.l.b16 %v682
      %v706 = vunpack.c.l.b16 %v683
      %v707 = vunpack.c.l.b16 %v684
      %v708 = vunpack.c.l.b16 %v685
      %v709 = vunpack.c.l.b16 %v686
      %v710 = vunpack.c.l.b16 %v687
      %v711 = vpack.c.b16 %v704, %v703
      %v712 = vpack.c.b16 %v706, %v705
      %v713 = vpack.c.b16 %v708, %v707
      %v714 = vpack.c.b16 %v710, %v709
      %vm719 = vcmask 523264
      %v721 = vsel %vm719, %v673, 0
      %v724 = vsel %vm719, %v674, 0
      %v727 = vsel %vm719, %v675, 0
      %v730 = vsel %vm719, %v676, 0
      %v733 = vsel %vm719, %v677, 0
      %v736 = vsel %vm719, %v678, 0
      %v739 = vsel %vm719, %v679, 0
      %741 = vmatprep.subr.bf16.mxu0 0
      %742 = vmatpush1.bf16.msra.mxu0 %v711
      %743 = vmatprep.subr.bf16.mxu0 0
      %744 = vmatpush1.bf16.msra.mxu0 %v712
      %745 = vmatprep.subr.bf16.mxu0 0
      %746 = vmatpush1.bf16.msra.mxu0 %v713
      %747 = vmatprep.subr.bf16.mxu0 0
      %748 = vmatpush1.bf16.msra.mxu0 %v714
      %749 = vmatprep.subr.bf16.mxu0 0
      %750 = vmatpush1.bf16.msra.mxu0 0
      %751 = vmatprep.subr.bf16.mxu0 0
      %752 = vmatpush1.bf16.msra.mxu0 0
      %753 = vmatprep.subr.bf16.mxu0 0
      %754 = vmatpush1.bf16.msra.mxu0 0
      %755 = vmatprep.subr.bf16.mxu0 0
      %756 = vmatpush1.bf16.msra.mxu0 0
      %757 = vmatprep.subr.bf16.mxu0 0
      %758 = vmatpush1.bf16.msra.mxu0 0
      %759 = vmatprep.subr.bf16.mxu0 0
      %760 = vmatpush1.bf16.msra.mxu0 0
      %761 = vmatprep.subr.bf16.mxu0 0
      %762 = vmatpush1.bf16.msra.mxu0 0
      %763 = vmatprep.subr.bf16.mxu0 0
      %764 = vmatpush1.bf16.msra.mxu0 0
      %765 = vmatprep.subr.bf16.mxu0 0
      %766 = vmatpush1.bf16.msra.mxu0 0
      %767 = vmatprep.subr.bf16.mxu0 0
      %768 = vmatpush1.bf16.msra.mxu0 0
      %769 = vmatprep.subr.bf16.mxu0 0
      %770 = vmatpush1.bf16.msra.mxu0 0
      %771 = vmatprep.subr.bf16.mxu0 0
      %772 = vmatpush1.bf16.msra.mxu0 0
      %773 = vmatprep.mubr.bf16.mxu0 0
      %774 = vmatmul.mubr.bf16.gmra.mrb[0].mxu0 %v721
      %v775 = vpop.f32.mrb[0].mxu0
      %v776 = vadd.f32 %v693, %v775
      %v777 = vpop.f32.mrb[0].mxu0
      %v778 = vpop.f32.mrb[0].mxu0
      %v779 = vadd.f32 %v693, %v778
      %v780 = vpop.f32.mrb[0].mxu0
      %781 = vmatprep.mubr.bf16.mxu0 0
      %782 = vmatmul.mubr.bf16.gmra.mrb[0].mxu0 %v724
      %v783 = vpop.f32.mrb[0].mxu0
      %v784 = vadd.f32 %v693, %v783
      %v785 = vpop.f32.mrb[0].mxu0
      %v786 = vpop.f32.mrb[0].mxu0
      %v787 = vadd.f32 %v693, %v786
      %v788 = vpop.f32.mrb[0].mxu0
      %789 = vmatprep.mubr.bf16.mxu0 0
      %790 = vmatmul.mubr.bf16.gmra.mrb[0].mxu0 %v727
      %v791 = vpop.f32.mrb[0].mxu0
      %v792 = vadd.f32 %v693, %v791
      %v793 = vpop.f32.mrb[0].mxu0
      %v794 = vpop.f32.mrb[0].mxu0
      %v795 = vadd.f32 %v693, %v794
      %v796 = vpop.f32.mrb[0].mxu0
      %797 = vmatprep.mubr.bf16.mxu0 0
      %798 = vmatmul.mubr.bf16.gmra.mrb[0].mxu0 %v730
      %v799 = vpop.f32.mrb[0].mxu0
      %v800 = vadd.f32 %v693, %v799
      %v801 = vpop.f32.mrb[0].mxu0
      %v802 = vpop.f32.mrb[0].mxu0
      %v803 = vadd.f32 %v693, %v802
      %v804 = vpop.f32.mrb[0].mxu0
      %805 = vmatprep.mubr.bf16.mxu0 0
      %806 = vmatmul.mubr.bf16.gmra.mrb[0].mxu0 %v733
      %v807 = vpop.f32.mrb[0].mxu0
      %v808 = vadd.f32 %v693, %v807
      %v809 = vpop.f32.mrb[0].mxu0
      %v810 = vpop.f32.mrb[0].mxu0
      %v811 = vadd.f32 %v693, %v810
      %v812 = vpop.f32.mrb[0].mxu0
      %813 = vmatprep.mubr.bf16.mxu0 0
      %814 = vmatmul.mubr.bf16.gmra.mrb[0].mxu0 %v736
      %v815 = vpop.f32.mrb[0].mxu0
      %v816 = vadd.f32 %v693, %v815
      %v817 = vpop.f32.mrb[0].mxu0
      %v818 = vpop.f32.mrb[0].mxu0
      %v819 = vadd.f32 %v693, %v818
      %v820 = vpop.f32.mrb[0].mxu0
      %821 = vmatprep.mubr.bf16.mxu0 0
      %822 = vmatmul.mubr.bf16.gmra.mrb[0].mxu0 %v739
      %v823 = vpop.f32.mrb[0].mxu0
      %v824 = vadd.f32 %v693, %v823
      %v825 = vpop.f32.mrb[0].mxu0
      %v826 = vpop.f32.mrb[0].mxu0
      %v827 = vadd.f32 %v693, %v826
      %v828 = vpop.f32.mrb[0].mxu0
      %829 = vdwg.mxu0
      %v830 = vmax.f32 %v776, 0.0
      %v831 = vmax.f32 %v779, 0.0
      %v832 = vmax.f32 %v784, 0.0
      %v833 = vmax.f32 %v787, 0.0
      %v834 = vmax.f32 %v792, 0.0
      %v835 = vmax.f32 %v795, 0.0
      %v836 = vmax.f32 %v800, 0.0
      %v837 = vmax.f32 %v803, 0.0
      %v838 = vmax.f32 %v808, 0.0
      %v839 = vmax.f32 %v811, 0.0
      %v840 = vmax.f32 %v816, 0.0
      %v841 = vmax.f32 %v819, 0.0
      %v842 = vmax.f32 %v824, 0.0
      %v843 = vmax.f32 %v827, 0.0
      %v844 = vpack.c.bf16 %v831, %v830
      %v845 = vpack.c.bf16 %v833, %v832
      %v846 = vpack.c.bf16 %v835, %v834
      %v847 = vpack.c.bf16 %v837, %v836
      %v848 = vpack.c.bf16 %v839, %v838
      %v849 = vpack.c.bf16 %v841, %v840
      %v850 = vpack.c.bf16 %v843, %v842
      %v851 = vld [vmem:[%s6] sm:$0xf]
      %v852 = vld [vmem:[%s6 + $0x4] sm:$0xf]
      %v853 = vld [vmem:[%s6 + $0x8] sm:$0xf]
      %v854 = vld [vmem:[%s6 + $0xc] sm:$0xf]
      %v855 = vld [vmem:[%s6 + $0x10] sm:$0xf]
      %v856 = vld [vmem:[%s6 + $0x14] sm:$0xf]
      %v857 = vld [vmem:[%s6 + $0x18] sm:$0xf]
      %v858 = vld [vmem:[%s6 + $0x1c] sm:$0xf]
      %v859 = vld [vmem:[%s6 + $0x20] sm:$0xf]
      %v860 = vld [vmem:[%s6 + $0x24] sm:$0xf]
      %v861 = vld [vmem:[%s6 + $0x28] sm:$0xf]
      %v862 = vld [vmem:[%s6 + $0x2c] sm:$0xf]
      %v863 = vld [vmem:[%s6 + $0x30] sm:$0xf]
      %v864 = vld [vmem:[%s6 + $0x34] sm:$0xf]
      %v865 = vld [vmem:[%s6 + $0x38] sm:$0xf]
      %v866 = vld [vmem:[%s6 + $0x3c] sm:$0xf]
      %v867 = vld [vmem:[%s469] sm:$0x1]
      %v869 = vlaneseq
      %v870 = vshrl.u32 %v869, 7
      %v871 = vsub.s32 0, %v870
      %v872 = vrot.slane %v867, %v871
      %v890 = vunpack.c.l.b16 %v851
      %v891 = vunpack.c.l.b16 %v852
      %v892 = vunpack.c.l.b16 %v853
      %v893 = vunpack.c.l.b16 %v854
      %v894 = vunpack.c.l.b16 %v855
      %v895 = vunpack.c.l.b16 %v856
      %v896 = vunpack.c.l.b16 %v857
      %v897 = vunpack.c.l.b16 %v858
      %v898 = vunpack.c.l.b16 %v859
      %v899 = vunpack.c.l.b16 %v860
      %v900 = vunpack.c.l.b16 %v861
      %v901 = vunpack.c.l.b16 %v862
      %v902 = vunpack.c.l.b16 %v863
      %v903 = vunpack.c.l.b16 %v864
      %v904 = vunpack.c.l.b16 %v865
      %v905 = vunpack.c.l.b16 %v866
      %v906 = vpack.c.b16 %v891, %v890
      %v907 = vpack.c.b16 %v893, %v892
      %v908 = vpack.c.b16 %v895, %v894
      %v909 = vpack.c.b16 %v897, %v896
      %v910 = vpack.c.b16 %v899, %v898
      %v911 = vpack.c.b16 %v901, %v900
      %v912 = vpack.c.b16 %v903, %v902
      %v913 = vpack.c.b16 %v905, %v904
      %922 = vmatprep.subr.bf16.mxu0 0
      %923 = vmatpush1.bf16.msra.mxu0 %v906
      %924 = vmatprep.subr.bf16.mxu0 0
      %925 = vmatpush1.bf16.msra.mxu0 %v907
      %926 = vmatprep.subr.bf16.mxu0 0
      %927 = vmatpush1.bf16.msra.mxu0 %v908
      %928 = vmatprep.subr.bf16.mxu0 0
      %929 = vmatpush1.bf16.msra.mxu0 %v909
      %930 = vmatprep.subr.bf16.mxu0 0
      %931 = vmatpush1.bf16.msra.mxu0 %v910
      %932 = vmatprep.subr.bf16.mxu0 0
      %933 = vmatpush1.bf16.msra.mxu0 %v911
      %934 = vmatprep.subr.bf16.mxu0 0
      %935 = vmatpush1.bf16.msra.mxu0 %v912
      %936 = vmatprep.subr.bf16.mxu0 0
      %937 = vmatpush1.bf16.msra.mxu0 %v913
      %938 = vmatprep.subr.bf16.mxu0 0
      %939 = vmatpush1.bf16.msra.mxu0 0
      %940 = vmatprep.subr.bf16.mxu0 0
      %941 = vmatpush1.bf16.msra.mxu0 0
      %942 = vmatprep.subr.bf16.mxu0 0
      %943 = vmatpush1.bf16.msra.mxu0 0
      %944 = vmatprep.subr.bf16.mxu0 0
      %945 = vmatpush1.bf16.msra.mxu0 0
      %946 = vmatprep.subr.bf16.mxu0 0
      %947 = vmatpush1.bf16.msra.mxu0 0
      %948 = vmatprep.subr.bf16.mxu0 0
      %949 = vmatpush1.bf16.msra.mxu0 0
      %950 = vmatprep.subr.bf16.mxu0 0
      %951 = vmatpush1.bf16.msra.mxu0 0
      %952 = vmatprep.subr.bf16.mxu0 0
      %953 = vmatpush1.bf16.msra.mxu0 0
      %954 = vmatprep.mubr.bf16.mxu0 0
      %955 = vmatmul.mubr.bf16.gmra.mrb[0].mxu0 %v844
      %v956 = vpop.f32.mrb[0].mxu0
      %v957 = vadd.f32 %v872, %v956
      %v958 = vpop.f32.mrb[0].mxu0
      %v959 = vpop.f32.mrb[0].mxu0
      %v960 = vadd.f32 %v872, %v959
      %v961 = vpop.f32.mrb[0].mxu0
      %962 = vmatprep.mubr.bf16.mxu0 0
      %963 = vmatmul.mubr.bf16.gmra.mrb[0].mxu0 %v845
      %v964 = vpop.f32.mrb[0].mxu0
      %v965 = vadd.f32 %v872, %v964
      %v966 = vpop.f32.mrb[0].mxu0
      %v967 = vpop.f32.mrb[0].mxu0
      %v968 = vadd.f32 %v872, %v967
      %v969 = vpop.f32.mrb[0].mxu0
      %970 = vmatprep.mubr.bf16.mxu0 0
      %971 = vmatmul.mubr.bf16.gmra.mrb[0].mxu0 %v846
      %v972 = vpop.f32.mrb[0].mxu0
      %v973 = vadd.f32 %v872, %v972
      %v974 = vpop.f32.mrb[0].mxu0
      %v975 = vpop.f32.mrb[0].mxu0
      %v976 = vadd.f32 %v872, %v975
      %v977 = vpop.f32.mrb[0].mxu0
      %978 = vmatprep.mubr.bf16.mxu0 0
      %979 = vmatmul.mubr.bf16.gmra.mrb[0].mxu0 %v847
      %v980 = vpop.f32.mrb[0].mxu0
      %v981 = vadd.f32 %v872, %v980
      %v982 = vpop.f32.mrb[0].mxu0
      %v983 = vpop.f32.mrb[0].mxu0
      %v984 = vadd.f32 %v872, %v983
      %v985 = vpop.f32.mrb[0].mxu0
      %986 = vmatprep.mubr.bf16.mxu0 0
      %987 = vmatmul.mubr.bf16.gmra.mrb[0].mxu0 %v848
      %v988 = vpop.f32.mrb[0].mxu0
      %v989 = vadd.f32 %v872, %v988
      %v990 = vpop.f32.mrb[0].mxu0
      %v991 = vpop.f32.mrb[0].mxu0
      %v992 = vadd.f32 %v872, %v991
      %v993 = vpop.f32.mrb[0].mxu0
      %994 = vmatprep.mubr.bf16.mxu0 0
      %995 = vmatmul.mubr.bf16.gmra.mrb[0].mxu0 %v849
      %v996 = vpop.f32.mrb[0].mxu0
      %v997 = vadd.f32 %v872, %v996
      %v998 = vpop.f32.mrb[0].mxu0
      %v999 = vpop.f32.mrb[0].mxu0
      %v1000 = vadd.f32 %v872, %v999
      %v1001 = vpop.f32.mrb[0].mxu0
      %1002 = vmatprep.mubr.bf16.mxu0 0
      %1003 = vmatmul.mubr.bf16.gmra.mrb[0].mxu0 %v850
      %v1004 = vpop.f32.mrb[0].mxu0
      %v1005 = vadd.f32 %v872, %v1004
      %v1006 = vpop.f32.mrb[0].mxu0
      %v1007 = vpop.f32.mrb[0].mxu0
      %v1008 = vadd.f32 %v872, %v1007
      %v1009 = vpop.f32.mrb[0].mxu0
      %1010 = vdwg.mxu0
      %v1011 = vmax.f32 %v957, 0.0
      %v1012 = vmax.f32 %v960, 0.0
      %v1013 = vmax.f32 %v965, 0.0
      %v1014 = vmax.f32 %v968, 0.0
      %v1015 = vmax.f32 %v973, 0.0
      %v1016 = vmax.f32 %v976, 0.0
      %v1017 = vmax.f32 %v981, 0.0
      %v1018 = vmax.f32 %v984, 0.0
      %v1019 = vmax.f32 %v989, 0.0
      %v1020 = vmax.f32 %v992, 0.0
      %v1021 = vmax.f32 %v997, 0.0
      %v1022 = vmax.f32 %v1000, 0.0
      %v1023 = vmax.f32 %v1005, 0.0
      %v1024 = vmax.f32 %v1008, 0.0
      %v1025 = vpack.c.bf16 %v1012, %v1011
      %v1026 = vpack.c.bf16 %v1014, %v1013
      %v1027 = vpack.c.bf16 %v1016, %v1015
      %v1028 = vpack.c.bf16 %v1018, %v1017
      %v1029 = vpack.c.bf16 %v1020, %v1019
      %v1030 = vpack.c.bf16 %v1022, %v1021
      %v1031 = vpack.c.bf16 %v1024, %v1023
      %v1039 = vunpack.c.l.b16 %v1025
      %v1040 = vunpack.c.h.b16 %v1025
      %v1041 = vunpack.c.l.b16 %v1026
      %v1042 = vunpack.c.h.b16 %v1026
      %v1043 = vunpack.c.l.b16 %v1027
      %v1044 = vunpack.c.h.b16 %v1027
      %v1045 = vunpack.c.l.b16 %v1028
      %v1046 = vunpack.c.h.b16 %v1028
      %v1047 = vunpack.c.l.b16 %v1029
      %v1048 = vunpack.c.h.b16 %v1029
      %v1049 = vunpack.c.l.b16 %v1030
      %v1050 = vunpack.c.h.b16 %v1030
      %v1051 = vunpack.c.l.b16 %v1031
      %v1052 = vunpack.c.h.b16 %v1031
      %v1053 = vpack.c.b16 %v1039, %v1039
      %v1054 = vpack.c.b16 %v1040, %v1040
      %v1055 = vpack.c.b16 %v1041, %v1041
      %v1056 = vpack.c.b16 %v1042, %v1042
      %v1057 = vpack.c.b16 %v1043, %v1043
      %v1058 = vpack.c.b16 %v1044, %v1044
      %v1059 = vpack.c.b16 %v1045, %v1045
      %v1060 = vpack.c.b16 %v1046, %v1046
      %v1061 = vpack.c.b16 %v1047, %v1047
      %v1062 = vpack.c.b16 %v1048, %v1048
      %v1063 = vpack.c.b16 %v1049, %v1049
      %v1064 = vpack.c.b16 %v1050, %v1050
      %v1065 = vpack.c.b16 %v1051, %v1051
      %v1066 = vpack.c.b16 %v1052, %v1052
      %1081 = vst [vmem:[%s478] sm:$0xf] %v1053
      %1082 = vst [vmem:[%s478 + $0x4] sm:$0xf] %v1054
      %1083 = vst [vmem:[%s478 + $0x8] sm:$0xf] %v1055
      %1084 = vst [vmem:[%s478 + $0xc] sm:$0xf] %v1056
      %1085 = vst [vmem:[%s478 + $0x10] sm:$0xf] %v1057
      %1086 = vst [vmem:[%s478 + $0x14] sm:$0xf] %v1058
      %1087 = vst [vmem:[%s478 + $0x18] sm:$0xf] %v1059
      %1088 = vst [vmem:[%s478 + $0x1c] sm:$0xf] %v1060
      %1089 = vst [vmem:[%s478 + $0x20] sm:$0xf] %v1061
      %1090 = vst [vmem:[%s478 + $0x24] sm:$0xf] %v1062
      %1091 = vst [vmem:[%s478 + $0x28] sm:$0xf] %v1063
      %1092 = vst [vmem:[%s478 + $0x2c] sm:$0xf] %v1064
      %1093 = vst [vmem:[%s478 + $0x30] sm:$0xf] %v1065
      %1094 = vst [vmem:[%s478 + $0x34] sm:$0xf] %v1066
      %v1095 = vld [vmem:[%s7] sm:$0xf]
      %v1096 = vld [vmem:[%s7 + $0x4] sm:$0xf]
      %v1097 = vld [vmem:[%s7 + $0x8] sm:$0xf]
      %v1098 = vld [vmem:[%s7 + $0xc] sm:$0xf]
      %v1099 = vld [vmem:[%s7 + $0x10] sm:$0xf]
      %v1100 = vld [vmem:[%s7 + $0x14] sm:$0xf]
      %v1101 = vld [vmem:[%s7 + $0x18] sm:$0xf]
      %v1102 = vld [vmem:[%s7 + $0x1c] sm:$0xf]
      %v1103 = vld [vmem:[%s7 + $0x20] sm:$0xf]
      %v1104 = vld [vmem:[%s7 + $0x24] sm:$0xf]
      %v1105 = vld [vmem:[%s7 + $0x28] sm:$0xf]
      %v1106 = vld [vmem:[%s7 + $0x2c] sm:$0xf]
      %v1107 = vld [vmem:[%s7 + $0x30] sm:$0xf]
      %v1108 = vld [vmem:[%s7 + $0x34] sm:$0xf]
      %v1109 = vld [vmem:[%s7 + $0x38] sm:$0xf]
      %v1110 = vld [vmem:[%s7 + $0x3c] sm:$0xf]
      %v1111 = vld [vmem:[%s8] sm:$0x1]
      %v1113 = vlaneseq
      %v1114 = vshrl.u32 %v1113, 7
      %v1115 = vsub.s32 0, %v1114
      %v1116 = vrot.slane %v1111, %v1115
      %v1134 = vunpack.c.l.b16 %v1095
      %v1135 = vunpack.c.l.b16 %v1096
      %v1136 = vunpack.c.l.b16 %v1097
      %v1137 = vunpack.c.l.b16 %v1098
      %v1138 = vunpack.c.l.b16 %v1099
      %v1139 = vunpack.c.l.b16 %v1100
      %v1140 = vunpack.c.l.b16 %v1101
      %v1141 = vunpack.c.l.b16 %v1102
      %v1142 = vunpack.c.l.b16 %v1103
      %v1143 = vunpack.c.l.b16 %v1104
      %v1144 = vunpack.c.l.b16 %v1105
      %v1145 = vunpack.c.l.b16 %v1106
      %v1146 = vunpack.c.l.b16 %v1107
      %v1147 = vunpack.c.l.b16 %v1108
      %v1148 = vunpack.c.l.b16 %v1109
      %v1149 = vunpack.c.l.b16 %v1110
      %v1150 = vpack.c.b16 %v1135, %v1134
      %v1151 = vpack.c.b16 %v1137, %v1136
      %v1152 = vpack.c.b16 %v1139, %v1138
      %v1153 = vpack.c.b16 %v1141, %v1140
      %v1154 = vpack.c.b16 %v1143, %v1142
      %v1155 = vpack.c.b16 %v1145, %v1144
      %v1156 = vpack.c.b16 %v1147, %v1146
      %v1157 = vpack.c.b16 %v1149, %v1148
      %1166 = vmatprep.subr.bf16.mxu0 0
      %1167 = vmatpush1.bf16.msra.mxu0 %v1150
      %1168 = vmatprep.subr.bf16.mxu0 0
      %1169 = vmatpush1.bf16.msra.mxu0 %v1151
      %1170 = vmatprep.subr.bf16.mxu0 0
      %1171 = vmatpush1.bf16.msra.mxu0 %v1152
      %1172 = vmatprep.subr.bf16.mxu0 0
      %1173 = vmatpush1.bf16.msra.mxu0 %v1153
      %1174 = vmatprep.subr.bf16.mxu0 0
      %1175 = vmatpush1.bf16.msra.mxu0 %v1154
      %1176 = vmatprep.subr.bf16.mxu0 0
      %1177 = vmatpush1.bf16.msra.mxu0 %v1155
      %1178 = vmatprep.subr.bf16.mxu0 0
      %1179 = vmatpush1.bf16.msra.mxu0 %v1156
      %1180 = vmatprep.subr.bf16.mxu0 0
      %1181 = vmatpush1.bf16.msra.mxu0 %v1157
      %1182 = vmatprep.subr.bf16.mxu0 0
      %1183 = vmatpush1.bf16.msra.mxu0 0
      %1184 = vmatprep.subr.bf16.mxu0 0
      %1185 = vmatpush1.bf16.msra.mxu0 0
      %1186 = vmatprep.subr.bf16.mxu0 0
      %1187 = vmatpush1.bf16.msra.mxu0 0
      %1188 = vmatprep.subr.bf16.mxu0 0
      %1189 = vmatpush1.bf16.msra.mxu0 0
      %1190 = vmatprep.subr.bf16.mxu0 0
      %1191 = vmatpush1.bf16.msra.mxu0 0
      %1192 = vmatprep.subr.bf16.mxu0 0
      %1193 = vmatpush1.bf16.msra.mxu0 0
      %1194 = vmatprep.subr.bf16.mxu0 0
      %1195 = vmatpush1.bf16.msra.mxu0 0
      %1196 = vmatprep.subr.bf16.mxu0 0
      %1197 = vmatpush1.bf16.msra.mxu0 0
      %1198 = vmatprep.mubr.bf16.mxu0 0
      %1199 = vmatmul.mubr.bf16.gmra.mrb[0].mxu0 %v1025
      %v1200 = vpop.f32.mrb[0].mxu0
      %v1201 = vadd.f32 %v1116, %v1200
      %v1202 = vpop.f32.mrb[0].mxu0
      %v1203 = vpop.f32.mrb[0].mxu0
      %v1204 = vadd.f32 %v1116, %v1203
      %v1205 = vpop.f32.mrb[0].mxu0
      %1206 = vmatprep.mubr.bf16.mxu0 0
      %1207 = vmatmul.mubr.bf16.gmra.mrb[0].mxu0 %v1026
      %v1208 = vpop.f32.mrb[0].mxu0
      %v1209 = vadd.f32 %v1116, %v1208
      %v1210 = vpop.f32.mrb[0].mxu0
      %v1211 = vpop.f32.mrb[0].mxu0
      %v1212 = vadd.f32 %v1116, %v1211
      %v1213 = vpop.f32.mrb[0].mxu0
      %1214 = vmatprep.mubr.bf16.mxu0 0
      %1215 = vmatmul.mubr.bf16.gmra.mrb[0].mxu0 %v1027
      %v1216 = vpop.f32.mrb[0].mxu0
      %v1217 = vadd.f32 %v1116, %v1216
      %v1218 = vpop.f32.mrb[0].mxu0
      %v1219 = vpop.f32.mrb[0].mxu0
      %v1220 = vadd.f32 %v1116, %v1219
      %v1221 = vpop.f32.mrb[0].mxu0
      %1222 = vmatprep.mubr.bf16.mxu0 0
      %1223 = vmatmul.mubr.bf16.gmra.mrb[0].mxu0 %v1028
      %v1224 = vpop.f32.mrb[0].mxu0
      %v1225 = vadd.f32 %v1116, %v1224
      %v1226 = vpop.f32.mrb[0].mxu0
      %v1227 = vpop.f32.mrb[0].mxu0
      %v1228 = vadd.f32 %v1116, %v1227
      %v1229 = vpop.f32.mrb[0].mxu0
      %1230 = vmatprep.mubr.bf16.mxu0 0
      %1231 = vmatmul.mubr.bf16.gmra.mrb[0].mxu0 %v1029
      %v1232 = vpop.f32.mrb[0].mxu0
      %v1233 = vadd.f32 %v1116, %v1232
      %v1234 = vpop.f32.mrb[0].mxu0
      %v1235 = vpop.f32.mrb[0].mxu0
      %v1236 = vadd.f32 %v1116, %v1235
      %v1237 = vpop.f32.mrb[0].mxu0
      %1238 = vmatprep.mubr.bf16.mxu0 0
      %1239 = vmatmul.mubr.bf16.gmra.mrb[0].mxu0 %v1030
      %v1240 = vpop.f32.mrb[0].mxu0
      %v1241 = vadd.f32 %v1116, %v1240
      %v1242 = vpop.f32.mrb[0].mxu0
      %v1243 = vpop.f32.mrb[0].mxu0
      %v1244 = vadd.f32 %v1116, %v1243
      %v1245 = vpop.f32.mrb[0].mxu0
      %1246 = vmatprep.mubr.bf16.mxu0 0
      %1247 = vmatmul.mubr.bf16.gmra.mrb[0].mxu0 %v1031
      %v1248 = vpop.f32.mrb[0].mxu0
      %v1249 = vadd.f32 %v1116, %v1248
      %v1250 = vpop.f32.mrb[0].mxu0
      %v1251 = vpop.f32.mrb[0].mxu0
      %v1252 = vadd.f32 %v1116, %v1251
      %v1253 = vpop.f32.mrb[0].mxu0
      %1254 = vdwg.mxu0
      %v1255 = vmax.f32 %v1201, 0.0
      %v1256 = vmax.f32 %v1204, 0.0
      %v1257 = vmax.f32 %v1209, 0.0
      %v1258 = vmax.f32 %v1212, 0.0
      %v1259 = vmax.f32 %v1217, 0.0
      %v1260 = vmax.f32 %v1220, 0.0
      %v1261 = vmax.f32 %v1225, 0.0
      %v1262 = vmax.f32 %v1228, 0.0
      %v1263 = vmax.f32 %v1233, 0.0
      %v1264 = vmax.f32 %v1236, 0.0
      %v1265 = vmax.f32 %v1241, 0.0
      %v1266 = vmax.f32 %v1244, 0.0
      %v1267 = vmax.f32 %v1249, 0.0
      %v1268 = vmax.f32 %v1252, 0.0
      %v1269 = vld [vmem:[%s9] sm:$0x1]
      %v1270 = vpack.c.bf16 %v1256, %v1255
      %v1271 = vpack.c.bf16 %v1258, %v1257
      %v1272 = vpack.c.bf16 %v1260, %v1259
      %v1273 = vpack.c.bf16 %v1262, %v1261
      %v1274 = vpack.c.bf16 %v1264, %v1263
      %v1275 = vpack.c.bf16 %v1266, %v1265
      %v1276 = vpack.c.bf16 %v1268, %v1267
      %v1277 = vld [vmem:[#allocation2] sm:$0x1]
      %1279 = vset.pattern.permute.xlu0 0
      %1280 = vperm.xlu0 %1279, %v1277
      %v1281 = vpop.permute.xlu0 %1280
      %v1283 = vlaneseq
      %v1284 = vshrl.u32 %v1283, 7
      %v1285 = vsub.s32 0, %v1284
      %v1286 = vrot.slane %v1281, %v1285
      %v1288 = vsel %vm719, %v1269, 0
      %v1291 = vsel %vm719, %v1270, 0
      %v1294 = vsel %vm719, %v1271, 0
      %v1297 = vsel %vm719, %v1272, 0
      %v1300 = vsel %vm719, %v1273, 0
      %v1303 = vsel %vm719, %v1274, 0
      %v1306 = vsel %vm719, %v1275, 0
      %v1309 = vsel %vm719, %v1276, 0
      %1311 = vmatprep.subr.bf16.mxu0 0
      %1312 = vmatpush1.bf16.xpose.msra.mxu0 %v1291
      %1313 = vmatprep.subr.bf16.mxu0 0
      %1314 = vmatpush1.bf16.xpose.msra.mxu0 %v1294
      %1315 = vmatprep.subr.bf16.mxu0 0
      %1316 = vmatpush1.bf16.xpose.msra.mxu0 %v1297
      %1317 = vmatprep.subr.bf16.mxu0 0
      %1318 = vmatpush1.bf16.xpose.msra.mxu0 %v1300
      %1319 = vmatprep.subr.bf16.mxu0 0
      %1320 = vmatpush1.bf16.xpose.msra.mxu0 %v1303
      %1321 = vmatprep.subr.bf16.mxu0 0
      %1322 = vmatpush1.bf16.xpose.msra.mxu0 %v1306
      %1323 = vmatprep.subr.bf16.mxu0 0
      %1324 = vmatpush1.bf16.xpose.msra.mxu0 %v1309
      %1325 = vmatprep.subr.bf16.mxu0 0
      %1326 = vmatpush1.bf16.xpose.msra.mxu0 0
      %1327 = vmatprep.subr.bf16.mxu0 0
      %1328 = vmatpush1.bf16.xpose.msra.mxu0 0
      %1329 = vmatprep.subr.bf16.mxu0 0
      %1330 = vmatpush1.bf16.xpose.msra.mxu0 0
      %1331 = vmatprep.subr.bf16.mxu0 0
      %1332 = vmatpush1.bf16.xpose.msra.mxu0 0
      %1333 = vmatprep.subr.bf16.mxu0 0
      %1334 = vmatpush1.bf16.xpose.msra.mxu0 0
      %1335 = vmatprep.subr.bf16.mxu0 0
      %1336 = vmatpush1.bf16.xpose.msra.mxu0 0
      %1337 = vmatprep.subr.bf16.mxu0 0
      %1338 = vmatpush1.bf16.xpose.msra.mxu0 0
      %1339 = vmatprep.subr.bf16.mxu0 0
      %1340 = vmatpush1.bf16.xpose.msra.mxu0 0
      %1341 = vmatprep.subr.bf16.mxu0 0
      %1342 = vmatpush1.bf16.xpose.msra.mxu0 0
      %1343 = vmatprep.mubr.bf16.mxu0 0
      %1344 = vmatmul.mubr.bf16.gmra.mrb[0].mxu0 %v1288
      %v1345 = vpop.f32.mrb[0].mxu0
      %v1346 = vadd.f32 %v1286, %v1345
      %v1347 = vpop.f32.mrb[0].mxu0
      %v1348 = vpop.f32.mrb[0].mxu0
      %v1349 = vpop.f32.mrb[0].mxu0
      %1350 = vdwg.mxu0
      %v1351 = vxor.u32 %v1346, 2147483648
      %v1352 = vmul.f32 %v1351, 1.442695
      %v1353 = vpow.pop %v1352
      %v1354 = vadd.f32 %v1353, 1.0
      %v1355 = vrcp.pop %v1354
      %v1356 = vmul.f32 1.0, %v1355
      %vm1357 = vcmask 909312
      %1358 = vst.msk [vmem:[%s485] sm:$0x1] %vm1357, %v1356
      %s1359 = smul.u32 14, %s31
      %p1360 = scmp.lt.s32.totalorder %s30, 1
      %s1361 = scalar_select %p1360, %s30, 1
      %p1362 = scmp.lt.s32.totalorder %s1359, 13
      %s1363 = scalar_select %p1362, %s1359, 13
      %s1364 = smul.addr %s1361, 14
      %s1365 = sadd.s32 %s1363, %s1364
      %s1366 = smul.addr %s1365, 4
      %s1367 = scalar_lea.vmem %s11, %s1366
      %p1368 = scmp.lt.s32.totalorder %s30, 1
      %s1369 = scalar_select %p1368, %s30, 1
      %p1370 = scmp.lt.s32.totalorder %s31, 0
      %s1371 = scalar_select %p1370, %s31, 0
      %s1372 = sadd.s32 %s1371, %s1369
      %s1373 = scalar_lea.vmem %s12, %s1372
      // Predicated region
      $region65: #{scorenet_forward.3} parent=63 // pred_check
        %p1374 = pneg %p301
      $region66: #{scorenet_forward.3} parent=63 // pred_check_branch
        %1376 = sbr.rel (%p1374) target = $region68
      $region67: #{scorenet_forward.3} parent=63 // pred_region
        %s1377 = smul.u32 14, %s31
      $region68: #{scorenet_forward.3} parent=63 // pred_fallthru
        _
      // Predicated region
      $region69: #{scorenet_forward.3} parent=63 // pred_check
        %p1378 = pneg %p329
      $region70: #{scorenet_forward.3} parent=63 // pred_check_branch
        %1380 = sbr.rel (%p1378) target = $region72
      $region71: #{scorenet_forward.3} parent=63 // pred_region
        _
      $region72: #{scorenet_forward.3} parent=63 // pred_fallthru
        _
    $region64: #{scorenet_forward.3} parent=5 // pred_fallthru
      _
    %p1381 = scmp.le.s32.totalorder 2, %s21
    // Predicated region
    $region73: #{scorenet_forward.3} parent=5 // pred_check
      %p1382 = pneg %p1381
    $region74: #{scorenet_forward.3} parent=5 // pred_check_branch
      %1384 = sbr.rel (%p1382) target = $region76
    $region75: #{scorenet_forward.3} parent=5 // pred_region
      %s1385 = ssub.s32 %s21, 2
      // Predicated region
      $region77: #{scorenet_forward.3} parent=75 // pred_check
        %p1386 = pneg %p307
      $region78: #{scorenet_forward.3} parent=75 // pred_check_branch
        %1388 = sbr.rel (%p1386) target = $region80
      $region79: #{scorenet_forward.3} parent=75 // pred_region
        %s1389 = smul.u32 14, %s33
        %p1390 = scmp.lt.s32.totalorder %s32, 1
        %s1391 = scalar_select %p1390, %s32, 1
        %p1392 = scmp.lt.s32.totalorder %s1389, 13
        %s1393 = scalar_select %p1392, %s1389, 13
        %s1394 = smul.addr %s1391, 14
        %s1395 = sadd.s32 %s1393, %s1394
        %s1396 = smul.addr %s1395, 4
        %s1397 = scalar_lea.vmem %s11, %s1396
      $region80: #{scorenet_forward.3} parent=75 // pred_fallthru
        _
      // Predicated region
      $region81: #{scorenet_forward.3} parent=75 // pred_check
        %p1398 = pneg %p335
      $region82: #{scorenet_forward.3} parent=75 // pred_check_branch
        %1400 = sbr.rel (%p1398) target = $region84
      $region83: #{scorenet_forward.3} parent=75 // pred_region
        %p1401 = scmp.lt.s32.totalorder %s32, 1
        %s1402 = scalar_select %p1401, %s32, 1
        %p1403 = scmp.lt.s32.totalorder %s33, 0
        %s1404 = scalar_select %p1403, %s33, 0
        %s1405 = sadd.s32 %s1404, %s1402
        %s1406 = scalar_lea.vmem %s12, %s1405
      $region84: #{scorenet_forward.3} parent=75 // pred_fallthru
        _
    $region76: #{scorenet_forward.3} parent=5 // pred_fallthru
      _
  $region6: #{scorenet_forward.3} parent=0 // loop_footer
    %s25 = sadd.s32 1, %s21
  $region7: #{scorenet_forward.3} parent=0 // loop_footer_branch
    %20 = sbr.rel target = $region3
  $region8: #{scorenet_forward.3} parent=0 // loop_exit
    _

</llo_original>
